<compile_context>
chip_gen: v6e
topology: v6e:2x2x1
jax: 0.10.0
libtpu: 0.0.40
codegen_flags: <defaults>
</compile_context>

<pallas_src>
import math

import jax
import jax.numpy as jnp
from jax.experimental import pallas as pl
from jax.experimental.pallas import tpu as pltpu


def _round_up(x, m):
    return ((x + m - 1) // m) * m


def _pick_batch_tile(batch):
    # Fill MXU rows where possible (multiples of 8, up to 256) while keeping
    # >= 2 grid steps so the 'parallel' axis can shard across v7x's two TCs.
    if batch % 8 != 0:
        return batch
    for cand in (256, 128, 64, 32, 16, 8):
        if cand * 2 <= batch and batch % cand == 0:
            return cand
    return batch


def cond_linear_kernel(x_ref, cond_ref,
                       w1_ref, b1_ref, w2r_ref, b2r_ref,
                       w3_ref, b3_ref, w4_ref, b4_ref,
                       out_ref):
    f32 = jnp.float32

    def dot(a, w):
        # Cast the activation to the (possibly bf16) weight dtype right at the
        # MXU; accumulate in f32. Elementwise math stays f32.
        return jnp.dot(a.astype(w.dtype), w, preferred_element_type=f32)

    x = x_ref[...].astype(f32)        # (TB, I)
    cond = cond_ref[...].astype(f32)  # (TB, C)

    # bias head: relu(cond @ W3 + b3) @ W4p + b4p   (output columns padded to 128k)
    h2 = jnp.maximum(dot(cond, w3_ref[...]) + b3_ref[...].astype(f32), 0.0)
    out = dot(h2, w4_ref[...]) + b4_ref[...].astype(f32)

    # hyper-linear head, fully on the MXU:
    #   h1   = relu(cond @ W1 + b1)                                    (TB, H)
    #   out += (h1 (x) x).reshape(TB, H*I) @ W2r + x @ B2r
    #        == einsum('boi,bi->bo', reshape(h1 @ W2 + b2, (TB,O,I)), x)
    h1 = jnp.maximum(dot(cond, w1_ref[...]) + b1_ref[...].astype(f32), 0.0)
    tb, hid = h1.shape
    dim_in = x.shape[-1]
    g = (h1[:, :, None] * x[:, None, :]).reshape(tb, hid * dim_in)    # (TB, H*I)
    out = out + dot(g, w2r_ref[...]) + dot(x, b2r_ref[...])

    out_ref[...] = out.astype(out_ref.dtype)   # lane-dense (TB, 128k) unmasked store


def prepare_params(params, *, dim_in, dim_out, mxu_dtype=jnp.float32):
    """One-time re-layout/padding/cast of the module parameters for the kernel."""
    w1, b1, w2, b2, w3, b3, w4, b4 = params
    hid = w1.shape[1]
    assert w2.shape == (hid, dim_out * dim_in)

    # W2r[h*I + i, o] = W2[h, o*I + i];   B2r[i, o] = b2[o*I + i]
    w2r = w2.reshape(hid, dim_out, dim_in).transpose(0, 2, 1).reshape(hid * dim_in, dim_out)
    b2r = b2.reshape(dim_out, dim_in).T                              # (I, O)

    # Lane-dense output: pad output columns to a multiple of 128.
    out_pad = _round_up(dim_out, 128)
    pad_o = lambda a: jnp.pad(a, ((0, 0), (0, out_pad - dim_out)))
    w2r_p, b2r_p, w4_p, b4_p = pad_o(w2r), pad_o(b2r), pad_o(w4), pad_o(b4)

    if mxu_dtype != jnp.float32:
        # Store matmul weights in the MXU dtype (halves HBM/VMEM bytes for W2r);
        # additive biases stay f32, accumulation is f32 in-kernel.
        w1 = w1.astype(mxu_dtype)
        w3 = w3.astype(mxu_dtype)
        w2r_p = w2r_p.astype(mxu_dtype)
        b2r_p = b2r_p.astype(mxu_dtype)
        w4_p = w4_p.astype(mxu_dtype)

    prepared = (w1, b1, w2r_p, b2r_p, w3, b3, w4_p, b4_p)
    return prepared, out_pad


def conditional_linear_prepared(x, cond, prepared, *, dim_out, out_pad,
                                batch_tile=None):
    batch, dim_in = x.shape
    dim_cond = cond.shape[1]

    if batch_tile is None:
        batch_tile = _pick_batch_tile(batch)
    assert batch % batch_tile == 0
    grid = (batch // batch_tile,)

    # Grid-invariant operands: constant index_map (no re-DMA across grid steps).
    full = lambda arr: pl.BlockSpec(arr.shape, lambda i: (0,) * arr.ndim)

    out_p = pl.pallas_call(
        cond_linear_kernel,
        out_shape=jax.ShapeDtypeStruct((batch, out_pad), jnp.float32),
        grid_spec=pltpu.PrefetchScalarGridSpec(
            num_scalar_prefetch=0,
            grid=grid,
            in_specs=[
                pl.BlockSpec((batch_tile, dim_in), lambda i: (i, 0)),
                pl.BlockSpec((batch_tile, dim_cond), lambda i: (i, 0)),
            ] + [full(a) for a in prepared],
            out_specs=pl.BlockSpec((batch_tile, out_pad), lambda i: (i, 0)),
        ),
        compiler_params=pltpu.CompilerParams(
            dimension_semantics=("parallel",)),
    )(x, cond, *prepared)

    return out_p[:, :dim_out]


def conditional_linear(x, cond, params, *, dim_in, dim_out,
                       batch_tile=None, mxu_dtype=jnp.float32):
    """Convenience wrapper: prepare + run (use prepare_params once in real use)."""
    prepared, out_pad = prepare_params(params, dim_in=dim_in, dim_out=dim_out,
                                       mxu_dtype=mxu_dtype)
    return conditional_linear_prepared(x, cond, prepared, dim_out=dim_out,
                                       out_pad=out_pad, batch_tile=batch_tile)


def init_params(key, dim_in, dim_out, dim_cond):
    """Deterministic init mimicking torch.nn.Linear defaults (U(-1/sqrt(fan_in), ..))."""
    hid = dim_cond // 2
    layers = [(dim_cond, hid), (hid, dim_in * dim_out),   # self.linear
              (dim_cond, hid), (hid, dim_out)]            # self.bias
    keys = jax.random.split(key, 2 * len(layers))
    params = []
    for li, (fan_in, fan_out) in enumerate(layers):
        bound = 1.0 / math.sqrt(fan_in)
        w = jax.random.uniform(keys[2 * li], (fan_in, fan_out), jnp.float32, -bound, bound)
        b = jax.random.uniform(keys[2 * li + 1], (1, fan_out), jnp.float32, -bound, bound)
        params += [w, b]
    return tuple(params)


def reference_forward(x, cond, params, *, dim_in, dim_out):
    w1, b1, w2, b2, w3, b3, w4, b4 = params
    hi = jax.lax.Precision.HIGHEST
    mm = lambda a, b: jnp.dot(a, b, precision=hi)
    h1 = jax.nn.relu(mm(cond, w1) + b1)
    lflat = mm(h1, w2) + b2
    h2 = jax.nn.relu(mm(cond, w3) + b3)
    bias = mm(h2, w4) + b4
    L = lflat.reshape(x.shape[0], dim_out, dim_in)
    return jnp.einsum('boi,bi->bo', L, x, precision=hi) + bias


if __name__ == "__main__":
    batch, dim_in, dim_out, dim_cond = 16, 16, 32, 64

    key = jax.random.PRNGKey(0)
    kx, kc, kp = jax.random.split(key, 3)
    x = jax.random.normal(kx, (batch, dim_in), jnp.float32)
    cond = jax.random.normal(kc, (batch, dim_cond), jnp.float32)
    params = init_params(kp, dim_in, dim_out, dim_cond)

    ref = reference_forward(x, cond, params, dim_in=dim_in, dim_out=dim_out)

    # f32 path (matches the PyTorch module's semantics), with one-time prepare.
    prepared, out_pad = prepare_params(params, dim_in=dim_in, dim_out=dim_out)
    out = conditional_linear_prepared(x, cond, prepared, dim_out=dim_out,
                                      out_pad=out_pad)
    out = jax.block_until_ready(out)
    assert out.shape == (batch, dim_out)
    assert jnp.allclose(out, ref, atol=1e-3, rtol=1e-3), "f32 kernel mismatch vs reference"

    # bf16-MXU fast path (v6e/v7x recommendation); looser tolerance vs f32 reference.
    out_bf16 = conditional_linear(x, cond, params, dim_in=dim_in, dim_out=dim_out,
                                  mxu_dtype=jnp.bfloat16)
    out_bf16 = jax.block_until_ready(out_bf16)
    assert out_bf16.shape == (batch, dim_out)
    assert jnp.allclose(out_bf16, ref, atol=1e-1, rtol=5e-2), "bf16 kernel drifted too far"

    print("KERNEL_OK")
</pallas_src>

<mosaic_0001>
module attributes {stable_mosaic.version = 11 : i64} {
  func.func @cond_linear_kernel(%arg0: i32, %arg1: memref<8x16xf32, #tpu.memory_space<vmem>>, %arg2: memref<8x64xf32, #tpu.memory_space<vmem>>, %arg3: memref<64x32xf32, #tpu.memory_space<vmem>>, %arg4: memref<1x32xf32, #tpu.memory_space<vmem>>, %arg5: memref<512x128xf32, #tpu.memory_space<vmem>>, %arg6: memref<16x128xf32, #tpu.memory_space<vmem>>, %arg7: memref<64x32xf32, #tpu.memory_space<vmem>>, %arg8: memref<1x32xf32, #tpu.memory_space<vmem>>, %arg9: memref<32x128xf32, #tpu.memory_space<vmem>>, %arg10: memref<1x128xf32, #tpu.memory_space<vmem>>, %arg11: memref<8x128xf32, #tpu.memory_space<vmem>>) attributes {dimension_semantics = [#tpu.dimension_semantics<parallel>], iteration_bounds = array<i64: 2>, scalar_prefetch = 0 : i64, scratch_operands = 0 : i64, tpu.core_type = #tpu.core_type<tc>, window_params = [{transform_indices = @transform_0, window_bounds = array<i64: 8, 16>}, {transform_indices = @transform_1, window_bounds = array<i64: 8, 64>}, {pipeline_mode = #tpu.pipeline_mode<synchronous>, transform_indices = @transform_2, window_bounds = array<i64: 64, 32>}, {pipeline_mode = #tpu.pipeline_mode<synchronous>, transform_indices = @transform_3, window_bounds = array<i64: 1, 32>}, {pipeline_mode = #tpu.pipeline_mode<synchronous>, transform_indices = @transform_4, window_bounds = array<i64: 512, 128>}, {pipeline_mode = #tpu.pipeline_mode<synchronous>, transform_indices = @transform_5, window_bounds = array<i64: 16, 128>}, {pipeline_mode = #tpu.pipeline_mode<synchronous>, transform_indices = @transform_6, window_bounds = array<i64: 64, 32>}, {pipeline_mode = #tpu.pipeline_mode<synchronous>, transform_indices = @transform_7, window_bounds = array<i64: 1, 32>}, {pipeline_mode = #tpu.pipeline_mode<synchronous>, transform_indices = @transform_8, window_bounds = array<i64: 32, 128>}, {pipeline_mode = #tpu.pipeline_mode<synchronous>, transform_indices = @transform_9, window_bounds = array<i64: 1, 128>}, {transform_indices = @transform_10, window_bounds = array<i64: 8, 128>}]} {
    %c0 = arith.constant 0 : index
    %c0_0 = arith.constant 0 : index
    %0 = vector.load %arg1[%c0, %c0_0] : memref<8x16xf32, #tpu.memory_space<vmem>>, vector<8x16xf32>
    %c0_1 = arith.constant 0 : index
    %c0_2 = arith.constant 0 : index
    %1 = vector.load %arg2[%c0_1, %c0_2] : memref<8x64xf32, #tpu.memory_space<vmem>>, vector<8x64xf32>
    %c0_3 = arith.constant 0 : index
    %c0_4 = arith.constant 0 : index
    %2 = vector.load %arg7[%c0_3, %c0_4] : memref<64x32xf32, #tpu.memory_space<vmem>>, vector<64x32xf32>
    %cst = arith.constant dense<0.000000e+00> : vector<8x32xf32>
    %3 = tpu.matmul %1, %2, %cst {dimension_numbers = #tpu.dot_dimension_numbers<[1], [0], [0], [1], [0, 0, 1, 1], [], []>} : vector<8x64xf32>, vector<64x32xf32>, vector<8x32xf32> -> vector<8x32xf32>
    %c0_5 = arith.constant 0 : index
    %c0_6 = arith.constant 0 : index
    %4 = vector.load %arg8[%c0_5, %c0_6] : memref<1x32xf32, #tpu.memory_space<vmem>>, vector<1x32xf32>
    %5 = vector.broadcast %4 : vector<1x32xf32> to vector<8x32xf32>
    %6 = arith.addf %3, %5 : vector<8x32xf32>
    %cst_7 = arith.constant 0.000000e+00 : f32
    %7 = vector.broadcast %cst_7 : f32 to vector<8x32xf32>
    %8 = arith.maximumf %6, %7 : vector<8x32xf32>
    %c0_8 = arith.constant 0 : index
    %c0_9 = arith.constant 0 : index
    %9 = vector.load %arg9[%c0_8, %c0_9] : memref<32x128xf32, #tpu.memory_space<vmem>>, vector<32x128xf32>
    %cst_10 = arith.constant dense<0.000000e+00> : vector<8x128xf32>
    %10 = tpu.matmul %8, %9, %cst_10 {dimension_numbers = #tpu.dot_dimension_numbers<[1], [0], [0], [1], [0, 0, 1, 1], [], []>} : vector<8x32xf32>, vector<32x128xf32>, vector<8x128xf32> -> vector<8x128xf32>
    %c0_11 = arith.constant 0 : index
    %c0_12 = arith.constant 0 : index
    %11 = vector.load %arg10[%c0_11, %c0_12] : memref<1x128xf32, #tpu.memory_space<vmem>>, vector<1x128xf32>
    %12 = vector.broadcast %11 : vector<1x128xf32> to vector<8x128xf32>
    %13 = arith.addf %10, %12 : vector<8x128xf32>
    %c0_13 = arith.constant 0 : index
    %c0_14 = arith.constant 0 : index
    %14 = vector.load %arg3[%c0_13, %c0_14] : memref<64x32xf32, #tpu.memory_space<vmem>>, vector<64x32xf32>
    %cst_15 = arith.constant dense<0.000000e+00> : vector<8x32xf32>
    %15 = tpu.matmul %1, %14, %cst_15 {dimension_numbers = #tpu.dot_dimension_numbers<[1], [0], [0], [1], [0, 0, 1, 1], [], []>} : vector<8x64xf32>, vector<64x32xf32>, vector<8x32xf32> -> vector<8x32xf32>
    %c0_16 = arith.constant 0 : index
    %c0_17 = arith.constant 0 : index
    %16 = vector.load %arg4[%c0_16, %c0_17] : memref<1x32xf32, #tpu.memory_space<vmem>>, vector<1x32xf32>
    %17 = vector.broadcast %16 : vector<1x32xf32> to vector<8x32xf32>
    %18 = arith.addf %15, %17 : vector<8x32xf32>
    %cst_18 = arith.constant 0.000000e+00 : f32
    %19 = vector.broadcast %cst_18 : f32 to vector<8x32xf32>
    %20 = arith.maximumf %18, %19 : vector<8x32xf32>
    %21 = vector.shape_cast %20 : vector<8x32xf32> to vector<8x32x1xf32>
    %22 = vector.shape_cast %0 : vector<8x16xf32> to vector<8x1x16xf32>
    %23 = vector.broadcast %21 : vector<8x32x1xf32> to vector<8x32x16xf32>
    %24 = vector.broadcast %22 : vector<8x1x16xf32> to vector<8x32x16xf32>
    %25 = arith.mulf %23, %24 : vector<8x32x16xf32>
    %26 = vector.shape_cast %25 : vector<8x32x16xf32> to vector<8x512xf32>
    %c0_19 = arith.constant 0 : index
    %c0_20 = arith.constant 0 : index
    %27 = vector.load %arg5[%c0_19, %c0_20] : memref<512x128xf32, #tpu.memory_space<vmem>>, vector<512x128xf32>
    %cst_21 = arith.constant dense<0.000000e+00> : vector<8x128xf32>
    %28 = tpu.matmul %26, %27, %cst_21 {dimension_numbers = #tpu.dot_dimension_numbers<[1], [0], [0], [1], [0, 0, 1, 1], [], []>} : vector<8x512xf32>, vector<512x128xf32>, vector<8x128xf32> -> vector<8x128xf32>
    %29 = arith.addf %13, %28 : vector<8x128xf32>
    %c0_22 = arith.constant 0 : index
    %c0_23 = arith.constant 0 : index
    %30 = vector.load %arg6[%c0_22, %c0_23] : memref<16x128xf32, #tpu.memory_space<vmem>>, vector<16x128xf32>
    %cst_24 = arith.constant dense<0.000000e+00> : vector<8x128xf32>
    %31 = tpu.matmul %0, %30, %cst_24 {dimension_numbers = #tpu.dot_dimension_numbers<[1], [0], [0], [1], [0, 0, 1, 1], [], []>} : vector<8x16xf32>, vector<16x128xf32>, vector<8x128xf32> -> vector<8x128xf32>
    %32 = arith.addf %29, %31 : vector<8x128xf32>
    %c0_25 = arith.constant 0 : index
    %c0_26 = arith.constant 0 : index
    %33 = vector.load %arg11[%c0_25, %c0_26] : memref<8x128xf32, #tpu.memory_space<vmem>>, vector<8x128xf32>
    tpu.vector_store %arg11[%c0_25, %c0_26], %32 {strides = array<i32>} : memref<8x128xf32, #tpu.memory_space<vmem>>, vector<8x128xf32>,
    return
  }
  func.func @transform_0(%arg0: i32) -> (i32, i32) {
    %c0_i32 = arith.constant 0 : i32
    %c0_i32_0 = arith.constant 0 : i32
    return %arg0, %c0_i32 : i32, i32
  }
  func.func @transform_1(%arg0: i32) -> (i32, i32) {
    %c0_i32 = arith.constant 0 : i32
    %c0_i32_0 = arith.constant 0 : i32
    return %arg0, %c0_i32 : i32, i32
  }
  func.func @transform_2(%arg0: i32) -> (i32, i32) {
    %c0_i32 = arith.constant 0 : i32
    %c0_i32_0 = arith.constant 0 : i32
    %c0_i32_1 = arith.constant 0 : i32
    return %c0_i32, %c0_i32_0 : i32, i32
  }
  func.func @transform_3(%arg0: i32) -> (i32, i32) {
    %c0_i32 = arith.constant 0 : i32
    %c0_i32_0 = arith.constant 0 : i32
    %c0_i32_1 = arith.constant 0 : i32
    return %c0_i32, %c0_i32_0 : i32, i32
  }
  func.func @transform_4(%arg0: i32) -> (i32, i32) {
    %c0_i32 = arith.constant 0 : i32
    %c0_i32_0 = arith.constant 0 : i32
    %c0_i32_1 = arith.constant 0 : i32
    return %c0_i32, %c0_i32_0 : i32, i32
  }
  func.func @transform_5(%arg0: i32) -> (i32, i32) {
    %c0_i32 = arith.constant 0 : i32
    %c0_i32_0 = arith.constant 0 : i32
    %c0_i32_1 = arith.constant 0 : i32
    return %c0_i32, %c0_i32_0 : i32, i32
  }
  func.func @transform_6(%arg0: i32) -> (i32, i32) {
    %c0_i32 = arith.constant 0 : i32
    %c0_i32_0 = arith.constant 0 : i32
    %c0_i32_1 = arith.constant 0 : i32
    return %c0_i32, %c0_i32_0 : i32, i32
  }
  func.func @transform_7(%arg0: i32) -> (i32, i32) {
    %c0_i32 = arith.constant 0 : i32
    %c0_i32_0 = arith.constant 0 : i32
    %c0_i32_1 = arith.constant 0 : i32
    return %c0_i32, %c0_i32_0 : i32, i32
  }
  func.func @transform_8(%arg0: i32) -> (i32, i32) {
    %c0_i32 = arith.constant 0 : i32
    %c0_i32_0 = arith.constant 0 : i32
    %c0_i32_1 = arith.constant 0 : i32
    return %c0_i32, %c0_i32_0 : i32, i32
  }
  func.func @transform_9(%arg0: i32) -> (i32, i32) {
    %c0_i32 = arith.constant 0 : i32
    %c0_i32_0 = arith.constant 0 : i32
    %c0_i32_1 = arith.constant 0 : i32
    return %c0_i32, %c0_i32_0 : i32, i32
  }
  func.func @transform_10(%arg0: i32) -> (i32, i32) {
    %c0_i32 = arith.constant 0 : i32
    %c0_i32_0 = arith.constant 0 : i32
    return %arg0, %c0_i32 : i32, i32
  }
}

</mosaic_0001>

<llo_original>
// kernel: tpu_custom_call.1
$region0: #{tpu_custom_call.1}
  #allocation0 [shape = 'u32[]', space=smem, size = 0x4, offset = 0x4, fixed_abs, tag = 'smem constant byte address 0x4 - core index']
  #allocation1 [shape = 'u32[144,128]{1,0:T(1,128)}', space=vmem, size = 0x12000, scoped, tag = 'internal scratch']
  %s0 = inlined_call_operand.vmem [shape: f32[16,16], index: 0, kind: input, shape index: {}]
  %s1 = inlined_call_operand.vmem [shape: f32[16,64], index: 1, kind: input, shape index: {}]
  %s2 = inlined_call_operand.vmem [shape: f32[64,32], index: 2, kind: input, shape index: {}]
  %s3 = inlined_call_operand.vmem [shape: f32[1,32], index: 3, kind: input, shape index: {}]
  %s4 = inlined_call_operand.hbm [shape: f32[512,128], index: 4, kind: input, shape index: {}]
  %s5 = inlined_call_operand.vmem [shape: f32[16,128], index: 5, kind: input, shape index: {}]
  %s6 = inlined_call_operand.vmem [shape: f32[64,32], index: 6, kind: input, shape index: {}]
  %s7 = inlined_call_operand.vmem [shape: f32[1,32], index: 7, kind: input, shape index: {}]
  %s8 = inlined_call_operand.vmem [shape: f32[32,128], index: 8, kind: input, shape index: {}]
  %s9 = inlined_call_operand.vmem [shape: f32[1,128], index: 9, kind: input, shape index: {}]
  %s10 = inlined_call_operand.hbm [shape: f32[16,128], index: 10, kind: output, shape index: {}]
  %s11 = sld [smem:[#allocation0]]
  $region77: #{tpu_custom_call.1} parent=0
    _
  %s13 = ssub.s32 1, %s11
  %s14 = scalar_select 0, %s13, %s11
  $region1: #{tpu_custom_call.1} parent=0
    #allocation2 [shape = 'u8[262144]{0}', space=vmem, size = 0x40000, scoped, tag = 'input window, operand 4, single buffered']
    #allocation3 [shape = 's32[2]{0}', space=sflag, size = 0x8, scoped, tag = 'scoped memory for tpu_custom_call.1']
    #allocation4 [shape = 's32[2]{0}', space=sflag, size = 0x8, scoped, tag = 'scoped memory for tpu_custom_call.1']
    #allocation5 [shape = 'u8[8192]{0}', space=vmem, size = 0x2000, scoped, tag = 'output window, operand 0']
    %15 = vsyncpa [#allocation3], 0
    %16 = vsyncpa [#allocation4], 0
    %s17 = scalar_lea.sflag [#allocation4], 1
    %18 = vsyncpa %s17, 0
    loop: start=0, step=1, limit=4
    $region2: #{tpu_custom_call.1} parent=1 // loop_pre_header
      _
    $region3: #{tpu_custom_call.1} parent=1 // loop_header
      %s20 = sphi 0, %s24
      %p21 = scmp.ge.s32.totalorder %s20, 4
      %s30 = sphi 0, %s32
      %s33 = sphi 0, %s30
      %s34 = sphi 0, %s33
      %s50 = sphi 0, %s34
      %s56 = sphi 0, %s58
      %s59 = sphi 0, %s56
      %s60 = sphi 0, %s59
      %s76 = sphi 0, %s60
      %s80 = sphi 0, %s80
      %s82 = sphi 0, %s80
      %s83 = sphi 0, %s82
      %s97 = sphi 0, %s83
      %s101 = sphi 0, %s101
      %s103 = sphi 0, %s101
      %s104 = sphi 0, %s103
      %s118 = sphi 0, %s104
      %s122 = sphi 0, %s122
      %s124 = sphi 0, %s122
      %s125 = sphi 0, %s124
      %s139 = sphi 0, %s125
      %s143 = sphi 0, %s143
      %s145 = sphi 0, %s143
      %s146 = sphi 0, %s145
      %s160 = sphi 0, %s146
      %s164 = sphi 0, %s164
      %s166 = sphi 0, %s164
      %s167 = sphi 0, %s166
      %s181 = sphi 0, %s167
      %s185 = sphi 0, %s185
      %s187 = sphi 0, %s185
      %s188 = sphi 0, %s187
      %s202 = sphi 0, %s188
      %s206 = sphi 0, %s206
      %s208 = sphi 0, %s206
      %s209 = sphi 0, %s208
      %s223 = sphi 0, %s209
      %s227 = sphi 0, %s227
      %s229 = sphi 0, %s227
      %s230 = sphi 0, %s229
      %s244 = sphi 0, %s230
      %s250 = sphi 0, %s252
      %s253 = sphi 0, %s250
      %s254 = sphi 0, %s253
      %s270 = sphi 0, %s254
    $region4: #{tpu_custom_call.1} parent=1 // loop_header_branch
      %23 = sbr.rel (%p21) target = $region8
    $region5: #{tpu_custom_call.1} parent=1 // loop_body
      %s25 = ssub.s32 %s20, 1
      %s26 = ssub.s32 %s20, 2
      %s27 = sadd.s32 %s20, 1
      %s28 = ssub.s32 %s20, %s27
      %p29 = scmp.eq.s32.totalorder %s28, 0
      %s31 = sadd.s32 %s30, 1
      %s32 = scalar_select %p29, %s30, %s31
      %p35 = pneg %p29
      %p36 = scmp.eq.s32.totalorder %s20, 1
      %p37 = por %p35, %p36
      %p38 = scmp.ne.s32.totalorder %s30, %s33
      %p39 = scmp.eq.s32.totalorder %s20, 0
      %p40 = por %p38, %p39
      %p41 = scmp.ne.s32.totalorder %s30, %s33
      %p42 = scmp.eq.s32.totalorder %s25, 1
      %p43 = por %p41, %p42
      %p44 = scmp.ne.s32.totalorder %s33, %s34
      %p45 = scmp.eq.s32.totalorder %s25, 0
      %p46 = por %p44, %p45
      %p47 = scmp.ne.s32.totalorder %s33, %s34
      %p48 = scmp.eq.s32.totalorder %s26, 1
      %p49 = por %p47, %p48
      %p51 = scmp.ne.s32.totalorder %s34, %s50
      %p52 = scmp.eq.s32.totalorder %s26, 0
      %p53 = por %p51, %p52
      %s54 = ssub.s32 %s20, %s27
      %p55 = scmp.eq.s32.totalorder %s54, 0
      %s57 = sadd.s32 %s56, 1
      %s58 = scalar_select %p55, %s56, %s57
      %p61 = pneg %p55
      %p62 = scmp.eq.s32.totalorder %s20, 1
      %p63 = por %p61, %p62
      %p64 = scmp.ne.s32.totalorder %s56, %s59
      %p65 = scmp.eq.s32.totalorder %s20, 0
      %p66 = por %p64, %p65
      %p67 = scmp.ne.s32.totalorder %s56, %s59
      %p68 = scmp.eq.s32.totalorder %s25, 1
      %p69 = por %p67, %p68
      %p70 = scmp.ne.s32.totalorder %s59, %s60
      %p71 = scmp.eq.s32.totalorder %s25, 0
      %p72 = por %p70, %p71
      %p73 = scmp.ne.s32.totalorder %s59, %s60
      %p74 = scmp.eq.s32.totalorder %s26, 1
      %p75 = por %p73, %p74
      %p77 = scmp.ne.s32.totalorder %s60, %s76
      %p78 = scmp.eq.s32.totalorder %s26, 0
      %p79 = por %p77, %p78
      %s81 = sadd.s32 %s80, 1
      %p84 = scmp.eq.s32.totalorder %s20, 1
      %p85 = scmp.ne.s32.totalorder %s80, %s82
      %p86 = scmp.eq.s32.totalorder %s20, 0
      %p87 = por %p85, %p86
      %p88 = scmp.ne.s32.totalorder %s80, %s82
      %p89 = scmp.eq.s32.totalorder %s25, 1
      %p90 = por %p88, %p89
      %p91 = scmp.ne.s32.totalorder %s82, %s83
      %p92 = scmp.eq.s32.totalorder %s25, 0
      %p93 = por %p91, %p92
      %p94 = scmp.ne.s32.totalorder %s82, %s83
      %p95 = scmp.eq.s32.totalorder %s26, 1
      %p96 = por %p94, %p95
      %p98 = scmp.ne.s32.totalorder %s83, %s97
      %p99 = scmp.eq.s32.totalorder %s26, 0
      %p100 = por %p98, %p99
      %s102 = sadd.s32 %s101, 1
      %p105 = scmp.eq.s32.totalorder %s20, 1
      %p106 = scmp.ne.s32.totalorder %s101, %s103
      %p107 = scmp.eq.s32.totalorder %s20, 0
      %p108 = por %p106, %p107
      %p109 = scmp.ne.s32.totalorder %s101, %s103
      %p110 = scmp.eq.s32.totalorder %s25, 1
      %p111 = por %p109, %p110
      %p112 = scmp.ne.s32.totalorder %s103, %s104
      %p113 = scmp.eq.s32.totalorder %s25, 0
      %p114 = por %p112, %p113
      %p115 = scmp.ne.s32.totalorder %s103, %s104
      %p116 = scmp.eq.s32.totalorder %s26, 1
      %p117 = por %p115, %p116
      %p119 = scmp.ne.s32.totalorder %s104, %s118
      %p120 = scmp.eq.s32.totalorder %s26, 0
      %p121 = por %p119, %p120
      %s123 = sadd.s32 %s122, 1
      %p126 = scmp.eq.s32.totalorder %s20, 1
      %p127 = scmp.ne.s32.totalorder %s122, %s124
      %p128 = scmp.eq.s32.totalorder %s20, 0
      %p129 = por %p127, %p128
      %p130 = scmp.ne.s32.totalorder %s122, %s124
      %p131 = scmp.eq.s32.totalorder %s25, 1
      %p132 = por %p130, %p131
      %p133 = scmp.ne.s32.totalorder %s124, %s125
      %p134 = scmp.eq.s32.totalorder %s25, 0
      %p135 = por %p133, %p134
      %p136 = scmp.ne.s32.totalorder %s124, %s125
      %p137 = scmp.eq.s32.totalorder %s26, 1
      %p138 = por %p136, %p137
      %p140 = scmp.ne.s32.totalorder %s125, %s139
      %p141 = scmp.eq.s32.totalorder %s26, 0
      %p142 = por %p140, %p141
      %s144 = sadd.s32 %s143, 1
      %p147 = scmp.eq.s32.totalorder %s20, 1
      %p148 = scmp.ne.s32.totalorder %s143, %s145
      %p149 = scmp.eq.s32.totalorder %s20, 0
      %p150 = por %p148, %p149
      %p151 = scmp.ne.s32.totalorder %s143, %s145
      %p152 = scmp.eq.s32.totalorder %s25, 1
      %p153 = por %p151, %p152
      %p154 = scmp.ne.s32.totalorder %s145, %s146
      %p155 = scmp.eq.s32.totalorder %s25, 0
      %p156 = por %p154, %p155
      %p157 = scmp.ne.s32.totalorder %s145, %s146
      %p158 = scmp.eq.s32.totalorder %s26, 1
      %p159 = por %p157, %p158
      %p161 = scmp.ne.s32.totalorder %s146, %s160
      %p162 = scmp.eq.s32.totalorder %s26, 0
      %p163 = por %p161, %p162
      %s165 = sadd.s32 %s164, 1
      %p168 = scmp.eq.s32.totalorder %s20, 1
      %p169 = scmp.ne.s32.totalorder %s164, %s166
      %p170 = scmp.eq.s32.totalorder %s20, 0
      %p171 = por %p169, %p170
      %p172 = scmp.ne.s32.totalorder %s164, %s166
      %p173 = scmp.eq.s32.totalorder %s25, 1
      %p174 = por %p172, %p173
      %p175 = scmp.ne.s32.totalorder %s166, %s167
      %p176 = scmp.eq.s32.totalorder %s25, 0
      %p177 = por %p175, %p176
      %p178 = scmp.ne.s32.totalorder %s166, %s167
      %p179 = scmp.eq.s32.totalorder %s26, 1
      %p180 = por %p178, %p179
      %p182 = scmp.ne.s32.totalorder %s167, %s181
      %p183 = scmp.eq.s32.totalorder %s26, 0
      %p184 = por %p182, %p183
      %s186 = sadd.s32 %s185, 1
      %p189 = scmp.eq.s32.totalorder %s20, 1
      %p190 = scmp.ne.s32.totalorder %s185, %s187
      %p191 = scmp.eq.s32.totalorder %s20, 0
      %p192 = por %p190, %p191
      %p193 = scmp.ne.s32.totalorder %s185, %s187
      %p194 = scmp.eq.s32.totalorder %s25, 1
      %p195 = por %p193, %p194
      %p196 = scmp.ne.s32.totalorder %s187, %s188
      %p197 = scmp.eq.s32.totalorder %s25, 0
      %p198 = por %p196, %p197
      %p199 = scmp.ne.s32.totalorder %s187, %s188
      %p200 = scmp.eq.s32.totalorder %s26, 1
      %p201 = por %p199, %p200
      %p203 = scmp.ne.s32.totalorder %s188, %s202
      %p204 = scmp.eq.s32.totalorder %s26, 0
      %p205 = por %p203, %p204
      %s207 = sadd.s32 %s206, 1
      %p210 = scmp.eq.s32.totalorder %s20, 1
      %p211 = scmp.ne.s32.totalorder %s206, %s208
      %p212 = scmp.eq.s32.totalorder %s20, 0
      %p213 = por %p211, %p212
      %p214 = scmp.ne.s32.totalorder %s206, %s208
      %p215 = scmp.eq.s32.totalorder %s25, 1
      %p216 = por %p214, %p215
      %p217 = scmp.ne.s32.totalorder %s208, %s209
      %p218 = scmp.eq.s32.totalorder %s25, 0
      %p219 = por %p217, %p218
      %p220 = scmp.ne.s32.totalorder %s208, %s209
      %p221 = scmp.eq.s32.totalorder %s26, 1
      %p222 = por %p220, %p221
      %p224 = scmp.ne.s32.totalorder %s209, %s223
      %p225 = scmp.eq.s32.totalorder %s26, 0
      %p226 = por %p224, %p225
      %s228 = sadd.s32 %s227, 1
      %p231 = scmp.eq.s32.totalorder %s20, 1
      %p232 = scmp.ne.s32.totalorder %s227, %s229
      %p233 = scmp.eq.s32.totalorder %s20, 0
      %p234 = por %p232, %p233
      %p235 = scmp.ne.s32.totalorder %s227, %s229
      %p236 = scmp.eq.s32.totalorder %s25, 1
      %p237 = por %p235, %p236
      %p238 = scmp.ne.s32.totalorder %s229, %s230
      %p239 = scmp.eq.s32.totalorder %s25, 0
      %p240 = por %p238, %p239
      %p241 = scmp.ne.s32.totalorder %s229, %s230
      %p242 = scmp.eq.s32.totalorder %s26, 1
      %p243 = por %p241, %p242
      %p245 = scmp.ne.s32.totalorder %s230, %s244
      %p246 = scmp.eq.s32.totalorder %s26, 0
      %p247 = por %p245, %p246
      %s248 = ssub.s32 %s20, %s27
      %p249 = scmp.eq.s32.totalorder %s248, 0
      %s251 = sadd.s32 %s250, 1
      %s252 = scalar_select %p249, %s250, %s251
      %p255 = pneg %p249
      %p256 = scmp.eq.s32.totalorder %s20, 1
      %p257 = por %p255, %p256
      %p258 = scmp.ne.s32.totalorder %s250, %s253
      %p259 = scmp.eq.s32.totalorder %s20, 0
      %p260 = por %p258, %p259
      %p261 = scmp.ne.s32.totalorder %s250, %s253
      %p262 = scmp.eq.s32.totalorder %s25, 1
      %p263 = por %p261, %p262
      %p264 = scmp.ne.s32.totalorder %s253, %s254
      %p265 = scmp.eq.s32.totalorder %s25, 0
      %p266 = por %p264, %p265
      %p267 = scmp.ne.s32.totalorder %s253, %s254
      %p268 = scmp.eq.s32.totalorder %s26, 1
      %p269 = por %p267, %p268
      %p271 = scmp.ne.s32.totalorder %s254, %s270
      %p272 = scmp.eq.s32.totalorder %s26, 0
      %p273 = por %p271, %p272
      %p274 = scmp.le.s32.totalorder 1, %s20
      %p275 = scmp.lt.s32.totalorder %s20, 3
      %p276 = pnand %p274, %p275
      %p277 = pneg %p276
      // Predicated region
      $region9: #{tpu_custom_call.1} parent=5 // pred_check
        _
      $region10: #{tpu_custom_call.1} parent=5 // pred_check_branch
        %279 = sbr.rel (%p276) target = $region12
      $region11: #{tpu_custom_call.1} parent=5 // pred_region
        %s280 = ssub.s32 %s20, 1
        // Predicated region
        $region13: #{tpu_custom_call.1} parent=11 // pred_check
          %p281 = pneg %p93
        $region14: #{tpu_custom_call.1} parent=11 // pred_check_branch
          %283 = sbr.rel (%p281) target = $region16
        $region15: #{tpu_custom_call.1} parent=11 // pred_region
          _
        $region16: #{tpu_custom_call.1} parent=11 // pred_fallthru
          _
        // Predicated region
        $region17: #{tpu_custom_call.1} parent=11 // pred_check
          %p284 = pneg %p114
        $region18: #{tpu_custom_call.1} parent=11 // pred_check_branch
          %286 = sbr.rel (%p284) target = $region20
        $region19: #{tpu_custom_call.1} parent=11 // pred_region
          _
        $region20: #{tpu_custom_call.1} parent=11 // pred_fallthru
          _
        // Predicated region
        $region21: #{tpu_custom_call.1} parent=11 // pred_check
          %p287 = pneg %p135
        $region22: #{tpu_custom_call.1} parent=11 // pred_check_branch
          %289 = sbr.rel (%p287) target = $region24
        $region23: #{tpu_custom_call.1} parent=11 // pred_region
          %s291 = ssub.s32 8192, 8192
          %292 = vsyncadd [#allocation3], %s291
          %s293 = sshll.u32 [#allocation2], 4
          %s294 = int_to_ptr.vmem [resolvable:$true] %s293
          %299 = dma.hbm_to_vmem [thread:$0]  %s4, 8192, %s294, [#allocation3], 128, 128, 8
        $region24: #{tpu_custom_call.1} parent=11 // pred_fallthru
          _
        // Predicated region
        $region25: #{tpu_custom_call.1} parent=11 // pred_check
          %p300 = pneg %p156
        $region26: #{tpu_custom_call.1} parent=11 // pred_check_branch
          %302 = sbr.rel (%p300) target = $region28
        $region27: #{tpu_custom_call.1} parent=11 // pred_region
          _
        $region28: #{tpu_custom_call.1} parent=11 // pred_fallthru
          _
        // Predicated region
        $region29: #{tpu_custom_call.1} parent=11 // pred_check
          %p303 = pneg %p177
        $region30: #{tpu_custom_call.1} parent=11 // pred_check_branch
          %305 = sbr.rel (%p303) target = $region32
        $region31: #{tpu_custom_call.1} parent=11 // pred_region
          _
        $region32: #{tpu_custom_call.1} parent=11 // pred_fallthru
          _
        // Predicated region
        $region33: #{tpu_custom_call.1} parent=11 // pred_check
          %p306 = pneg %p198
        $region34: #{tpu_custom_call.1} parent=11 // pred_check_branch
          %308 = sbr.rel (%p306) target = $region36
        $region35: #{tpu_custom_call.1} parent=11 // pred_region
          _
        $region36: #{tpu_custom_call.1} parent=11 // pred_fallthru
          _
        // Predicated region
        $region37: #{tpu_custom_call.1} parent=11 // pred_check
          %p309 = pneg %p219
        $region38: #{tpu_custom_call.1} parent=11 // pred_check_branch
          %311 = sbr.rel (%p309) target = $region40
        $region39: #{tpu_custom_call.1} parent=11 // pred_region
          _
        $region40: #{tpu_custom_call.1} parent=11 // pred_fallthru
          _
        // Predicated region
        $region41: #{tpu_custom_call.1} parent=11 // pred_check
          %p312 = pneg %p240
        $region42: #{tpu_custom_call.1} parent=11 // pred_check_branch
          %314 = sbr.rel (%p312) target = $region44
        $region43: #{tpu_custom_call.1} parent=11 // pred_region
          _
        $region44: #{tpu_custom_call.1} parent=11 // pred_fallthru
          _
      $region12: #{tpu_custom_call.1} parent=5 // pred_fallthru
        _
      %p315 = scmp.lt.s32.totalorder %s20, 2
      // Predicated region
      $region45: #{tpu_custom_call.1} parent=5 // pred_check
        %p316 = pneg %p315
      $region46: #{tpu_custom_call.1} parent=5 // pred_check_branch
        %318 = sbr.rel (%p316) target = $region48
      $region47: #{tpu_custom_call.1} parent=5 // pred_region
        // Predicated region
        $region49: #{tpu_custom_call.1} parent=47 // pred_check
          %p319 = pneg %p40
        $region50: #{tpu_custom_call.1} parent=47 // pred_check_branch
          %321 = sbr.rel (%p319) target = $region52
        $region51: #{tpu_custom_call.1} parent=47 // pred_region
          %p322 = scmp.lt.s32.totalorder %s20, 1
          %s323 = scalar_select %p322, %s20, 1
          %s324 = smul.addr %s323, 8
          %s325 = scalar_lea.vmem %s0, %s324
        $region52: #{tpu_custom_call.1} parent=47 // pred_fallthru
          _
        // Predicated region
        $region53: #{tpu_custom_call.1} parent=47 // pred_check
          %p326 = pneg %p66
        $region54: #{tpu_custom_call.1} parent=47 // pred_check_branch
          %328 = sbr.rel (%p326) target = $region56
        $region55: #{tpu_custom_call.1} parent=47 // pred_region
          %p329 = scmp.lt.s32.totalorder %s20, 1
          %s330 = scalar_select %p329, %s20, 1
          %s331 = smul.addr %s330, 8
          %s332 = scalar_lea.vmem %s1, %s331
        $region56: #{tpu_custom_call.1} parent=47 // pred_fallthru
          _
      $region48: #{tpu_custom_call.1} parent=5 // pred_fallthru
        _
      %p333 = scmp.le.s32.totalorder 1, %s20
      %p334 = scmp.lt.s32.totalorder %s20, 3
      %p335 = pnand %p333, %p334
      %p336 = pneg %p335
      // Predicated region
      $region57: #{tpu_custom_call.1} parent=5 // pred_check
        _
      $region58: #{tpu_custom_call.1} parent=5 // pred_check_branch
        %338 = sbr.rel (%p335) target = $region60
      $region59: #{tpu_custom_call.1} parent=5 // pred_region
        %s339 = ssub.s32 %s20, 1
        // Predicated region
        $region61: #{tpu_custom_call.1} parent=59 // pred_check
          %p340 = pneg %p135
        $region62: #{tpu_custom_call.1} parent=59 // pred_check_branch
          %342 = sbr.rel (%p340) target = $region64
        $region63: #{tpu_custom_call.1} parent=59 // pred_region
          %343 = dma.done [#allocation3], 8192
        $region64: #{tpu_custom_call.1} parent=59 // pred_fallthru
          _
        %p344 = scmp.lt.s32.totalorder %s25, 1
        %s345 = scalar_select %p344, %s25, 1
        %s346 = smul.addr %s345, 8
        %s347 = scalar_lea.vmem %s0, %s346
        %p348 = pneg %p46
        %p349 = pneg %p43
        %p350 = scmp.lt.s32.totalorder %s25, 1
        %s351 = scalar_select %p350, %s25, 1
        %s352 = smul.addr %s351, 8
        %s353 = scalar_lea.vmem %s1, %s352
        %p354 = pneg %p72
        %p355 = pneg %p69
        %p356 = pneg %p93
        %p357 = pneg %p90
        %p358 = pneg %p114
        %p359 = pneg %p111
        %p360 = pneg %p135
        %p361 = pneg %p132
        %p362 = pneg %p156
        %p363 = pneg %p153
        %p364 = pneg %p177
        %p365 = pneg %p174
        %p366 = pneg %p198
        %p367 = pneg %p195
        %p368 = pneg %p219
        %p369 = pneg %p216
        %p370 = pneg %p240
        %p371 = pneg %p237
        %p372 = pneg %p266
        %p373 = pneg %p263
        %s374 = sand.u32 %s253, 1
        %s375 = scalar_lea.sflag [#allocation4], %s374
        %s376 = sand.u32 %s253, 1
        %s377 = smul.addr %s376, 8
        %s378 = scalar_lea.vmem [#allocation5], %s377
        %p379 = scmp.lt.s32.totalorder %s25, 1
        %s380 = scalar_select %p379, %s25, 1
        %s381 = smul.addr %s380, 8
        %s382 = scalar_lea.vmem %s0, %s381
        %p383 = scmp.lt.s32.totalorder %s25, 1
        %s384 = scalar_select %p383, %s25, 1
        %s385 = smul.addr %s384, 8
        %s386 = scalar_lea.vmem %s1, %s385
        %v387 = vld [vmem:[%s382] sm:$0xff]
        %v388 = vld [vmem:[%s386] sm:$0xff]
        %v389 = vld [vmem:[%s6] sm:$0xff]
        %v390 = vld [vmem:[%s6 + $0x8] sm:$0xff]
        %v391 = vld [vmem:[%s6 + $0x10] sm:$0xff]
        %v392 = vld [vmem:[%s6 + $0x18] sm:$0xff]
        %v393 = vld [vmem:[%s6 + $0x20] sm:$0xff]
        %v394 = vld [vmem:[%s6 + $0x28] sm:$0xff]
        %v395 = vld [vmem:[%s6 + $0x30] sm:$0xff]
        %v396 = vld [vmem:[%s6 + $0x38] sm:$0xff]
        %v397 = vld [vmem:[%s7] sm:$0x1]
        %v399 = vlaneseq
        %v400 = vshrl.u32 %v399, 7
        %v401 = vsub.s32 0, %v400
        %v402 = vrot.slane %v397, %v401
        %vm404 = vcmask 523264
        %v406 = vsel %vm404, %v388, 0
        %408 = vmatprep.subr.mxu0 0.0
        %409 = vmatpush1.msra.mxu0 0.0
        %410 = vmatprep.subr.mxu0 0.0
        %411 = vmatpush1.msra.mxu0 0.0
        %412 = vmatprep.subr.mxu0 0.0
        %413 = vmatpush1.msra.mxu0 0.0
        %414 = vmatprep.subr.mxu0 0.0
        %415 = vmatpush1.msra.mxu0 0.0
        %416 = vmatprep.subr.mxu0 0.0
        %417 = vmatpush1.msra.mxu0 0.0
        %418 = vmatprep.subr.mxu0 0.0
        %419 = vmatpush1.msra.mxu0 0.0
        %420 = vmatprep.subr.mxu0 0.0
        %421 = vmatpush1.msra.mxu0 0.0
        %422 = vmatprep.subr.mxu0 0.0
        %423 = vmatpush1.msra.mxu0 0.0
        %424 = vmatprep.subr.mxu0 0.0
        %425 = vmatpush1.msra.mxu0 %v396
        %426 = vmatprep.subr.mxu0 0.0
        %427 = vmatpush1.msra.mxu0 %v395
        %428 = vmatprep.subr.mxu0 0.0
        %429 = vmatpush1.msra.mxu0 %v394
        %430 = vmatprep.subr.mxu0 0.0
        %431 = vmatpush1.msra.mxu0 %v393
        %432 = vmatprep.subr.mxu0 0.0
        %433 = vmatpush1.msra.mxu0 %v392
        %434 = vmatprep.subr.mxu0 0.0
        %435 = vmatpush1.msra.mxu0 %v391
        %436 = vmatprep.subr.mxu0 0.0
        %437 = vmatpush1.msra.mxu0 %v390
        %438 = vmatprep.subr.mxu0 0.0
        %439 = vmatpush1.msra.mxu0 %v389
        %440 = vmatprep.subr.mxu0 0.0
        %441 = vmatpush2.msra.mxu0 0.0
        %442 = vmatprep.subr.mxu0 0.0
        %443 = vmatpush2.msra.mxu0 0.0
        %444 = vmatprep.subr.mxu0 0.0
        %445 = vmatpush2.msra.mxu0 0.0
        %446 = vmatprep.subr.mxu0 0.0
        %447 = vmatpush2.msra.mxu0 0.0
        %448 = vmatprep.subr.mxu0 0.0
        %449 = vmatpush2.msra.mxu0 0.0
        %450 = vmatprep.subr.mxu0 0.0
        %451 = vmatpush2.msra.mxu0 0.0
        %452 = vmatprep.subr.mxu0 0.0
        %453 = vmatpush2.msra.mxu0 0.0
        %454 = vmatprep.subr.mxu0 0.0
        %455 = vmatpush2.msra.mxu0 0.0
        %456 = vmatprep.subr.mxu0 0.0
        %457 = vmatpush2.msra.mxu0 0.0
        %458 = vmatprep.subr.mxu0 0.0
        %459 = vmatpush2.msra.mxu0 0.0
        %460 = vmatprep.subr.mxu0 0.0
        %461 = vmatpush2.msra.mxu0 0.0
        %462 = vmatprep.subr.mxu0 0.0
        %463 = vmatpush2.msra.mxu0 0.0
        %464 = vmatprep.subr.mxu0 0.0
        %465 = vmatpush2.msra.mxu0 0.0
        %466 = vmatprep.subr.mxu0 0.0
        %467 = vmatpush2.msra.mxu0 0.0
        %468 = vmatprep.subr.mxu0 0.0
        %469 = vmatpush2.msra.mxu0 0.0
        %470 = vmatprep.subr.mxu0 0.0
        %471 = vmatpush2.msra.mxu0 0.0
        %472 = vmatprep.mubr.f32.mxu0 0.0
        %473 = vmatmul.mubr.f32.gmra.mxu0 %v406
        %v474 = vpop.f32.mrf.mxu0
        %v475 = vadd.f32 %v402, %v474
        %v476 = vpop.f32.mrf.mxu0
        %477 = vdwg.mxu0
        %v478 = vmax.f32 %v475, 0.0
        %v479 = vld [vmem:[%s8] sm:$0xff]
        %v480 = vld [vmem:[%s8 + $0x8] sm:$0xff]
        %v481 = vld [vmem:[%s8 + $0x10] sm:$0xff]
        %v482 = vld [vmem:[%s8 + $0x18] sm:$0xff]
        %v483 = vld [vmem:[%s9] sm:$0x1]
        %v485 = vlaneseq
        %v486 = vshrl.u32 %v485, 7
        %v487 = vsub.s32 0, %v486
        %v488 = vrot.slane %v483, %v487
        %vm490 = vcmask 261120
        %v492 = vsel %vm490, %v478, 0
        %494 = vmatprep.subr.mxu0 0.0
        %495 = vmatpush1.msra.mxu0 0.0
        %496 = vmatprep.subr.mxu0 0.0
        %497 = vmatpush1.msra.mxu0 0.0
        %498 = vmatprep.subr.mxu0 0.0
        %499 = vmatpush1.msra.mxu0 0.0
        %500 = vmatprep.subr.mxu0 0.0
        %501 = vmatpush1.msra.mxu0 0.0
        %502 = vmatprep.subr.mxu0 0.0
        %503 = vmatpush1.msra.mxu0 0.0
        %504 = vmatprep.subr.mxu0 0.0
        %505 = vmatpush1.msra.mxu0 0.0
        %506 = vmatprep.subr.mxu0 0.0
        %507 = vmatpush1.msra.mxu0 0.0
        %508 = vmatprep.subr.mxu0 0.0
        %509 = vmatpush1.msra.mxu0 0.0
        %510 = vmatprep.subr.mxu0 0.0
        %511 = vmatpush1.msra.mxu0 0.0
        %512 = vmatprep.subr.mxu0 0.0
        %513 = vmatpush1.msra.mxu0 0.0
        %514 = vmatprep.subr.mxu0 0.0
        %515 = vmatpush1.msra.mxu0 0.0
        %516 = vmatprep.subr.mxu0 0.0
        %517 = vmatpush1.msra.mxu0 0.0
        %518 = vmatprep.subr.mxu0 0.0
        %519 = vmatpush1.msra.mxu0 %v482
        %520 = vmatprep.subr.mxu0 0.0
        %521 = vmatpush1.msra.mxu0 %v481
        %522 = vmatprep.subr.mxu0 0.0
        %523 = vmatpush1.msra.mxu0 %v480
        %524 = vmatprep.subr.mxu0 0.0
        %525 = vmatpush1.msra.mxu0 %v479
        %526 = vmatprep.subr.mxu0 0.0
        %527 = vmatpush2.msra.mxu0 0.0
        %528 = vmatprep.subr.mxu0 0.0
        %529 = vmatpush2.msra.mxu0 0.0
        %530 = vmatprep.subr.mxu0 0.0
        %531 = vmatpush2.msra.mxu0 0.0
        %532 = vmatprep.subr.mxu0 0.0
        %533 = vmatpush2.msra.mxu0 0.0
        %534 = vmatprep.subr.mxu0 0.0
        %535 = vmatpush2.msra.mxu0 0.0
        %536 = vmatprep.subr.mxu0 0.0
        %537 = vmatpush2.msra.mxu0 0.0
        %538 = vmatprep.subr.mxu0 0.0
        %539 = vmatpush2.msra.mxu0 0.0
        %540 = vmatprep.subr.mxu0 0.0
        %541 = vmatpush2.msra.mxu0 0.0
        %542 = vmatprep.subr.mxu0 0.0
        %543 = vmatpush2.msra.mxu0 0.0
        %544 = vmatprep.subr.mxu0 0.0
        %545 = vmatpush2.msra.mxu0 0.0
        %546 = vmatprep.subr.mxu0 0.0
        %547 = vmatpush2.msra.mxu0 0.0
        %548 = vmatprep.subr.mxu0 0.0
        %549 = vmatpush2.msra.mxu0 0.0
        %550 = vmatprep.subr.mxu0 0.0
        %551 = vmatpush2.msra.mxu0 0.0
        %552 = vmatprep.subr.mxu0 0.0
        %553 = vmatpush2.msra.mxu0 0.0
        %554 = vmatprep.subr.mxu0 0.0
        %555 = vmatpush2.msra.mxu0 0.0
        %556 = vmatprep.subr.mxu0 0.0
        %557 = vmatpush2.msra.mxu0 0.0
        %558 = vmatprep.mubr.f32.mxu0 0.0
        %559 = vmatmul.mubr.f32.gmra.mxu0 %v492
        %v560 = vpop.f32.mrf.mxu0
        %v561 = vadd.f32 %v488, %v560
        %v562 = vpop.f32.mrf.mxu0
        %563 = vdwg.mxu0
        %v564 = vld [vmem:[%s2] sm:$0xff]
        %v565 = vld [vmem:[%s2 + $0x8] sm:$0xff]
        %v566 = vld [vmem:[%s2 + $0x10] sm:$0xff]
        %v567 = vld [vmem:[%s2 + $0x18] sm:$0xff]
        %v568 = vld [vmem:[%s2 + $0x20] sm:$0xff]
        %v569 = vld [vmem:[%s2 + $0x28] sm:$0xff]
        %v570 = vld [vmem:[%s2 + $0x30] sm:$0xff]
        %v571 = vld [vmem:[%s2 + $0x38] sm:$0xff]
        %v572 = vld [vmem:[%s3] sm:$0x1]
        %v574 = vlaneseq
        %v575 = vshrl.u32 %v574, 7
        %v576 = vsub.s32 0, %v575
        %v577 = vrot.slane %v572, %v576
        %579 = vmatprep.subr.mxu0 0.0
        %580 = vmatpush1.msra.mxu0 0.0
        %581 = vmatprep.subr.mxu0 0.0
        %582 = vmatpush1.msra.mxu0 0.0
        %583 = vmatprep.subr.mxu0 0.0
        %584 = vmatpush1.msra.mxu0 0.0
        %585 = vmatprep.subr.mxu0 0.0
        %586 = vmatpush1.msra.mxu0 0.0
        %587 = vmatprep.subr.mxu0 0.0
        %588 = vmatpush1.msra.mxu0 0.0
        %589 = vmatprep.subr.mxu0 0.0
        %590 = vmatpush1.msra.mxu0 0.0
        %591 = vmatprep.subr.mxu0 0.0
        %592 = vmatpush1.msra.mxu0 0.0
        %593 = vmatprep.subr.mxu0 0.0
        %594 = vmatpush1.msra.mxu0 0.0
        %595 = vmatprep.subr.mxu0 0.0
        %596 = vmatpush1.msra.mxu0 %v571
        %597 = vmatprep.subr.mxu0 0.0
        %598 = vmatpush1.msra.mxu0 %v570
        %599 = vmatprep.subr.mxu0 0.0
        %600 = vmatpush1.msra.mxu0 %v569
        %601 = vmatprep.subr.mxu0 0.0
        %602 = vmatpush1.msra.mxu0 %v568
        %603 = vmatprep.subr.mxu0 0.0
        %604 = vmatpush1.msra.mxu0 %v567
        %605 = vmatprep.subr.mxu0 0.0
        %606 = vmatpush1.msra.mxu0 %v566
        %607 = vmatprep.subr.mxu0 0.0
        %608 = vmatpush1.msra.mxu0 %v565
        %609 = vmatprep.subr.mxu0 0.0
        %610 = vmatpush1.msra.mxu0 %v564
        %611 = vmatprep.subr.mxu0 0.0
        %612 = vmatpush2.msra.mxu0 0.0
        %613 = vmatprep.subr.mxu0 0.0
        %614 = vmatpush2.msra.mxu0 0.0
        %615 = vmatprep.subr.mxu0 0.0
        %616 = vmatpush2.msra.mxu0 0.0
        %617 = vmatprep.subr.mxu0 0.0
        %618 = vmatpush2.msra.mxu0 0.0
        %619 = vmatprep.subr.mxu0 0.0
        %620 = vmatpush2.msra.mxu0 0.0
        %621 = vmatprep.subr.mxu0 0.0
        %622 = vmatpush2.msra.mxu0 0.0
        %623 = vmatprep.subr.mxu0 0.0
        %624 = vmatpush2.msra.mxu0 0.0
        %625 = vmatprep.subr.mxu0 0.0
        %626 = vmatpush2.msra.mxu0 0.0
        %627 = vmatprep.subr.mxu0 0.0
        %628 = vmatpush2.msra.mxu0 0.0
        %629 = vmatprep.subr.mxu0 0.0
        %630 = vmatpush2.msra.mxu0 0.0
        %631 = vmatprep.subr.mxu0 0.0
        %632 = vmatpush2.msra.mxu0 0.0
        %633 = vmatprep.subr.mxu0 0.0
        %634 = vmatpush2.msra.mxu0 0.0
        %635 = vmatprep.subr.mxu0 0.0
        %636 = vmatpush2.msra.mxu0 0.0
        %637 = vmatprep.subr.mxu0 0.0
        %638 = vmatpush2.msra.mxu0 0.0
        %639 = vmatprep.subr.mxu0 0.0
        %640 = vmatpush2.msra.mxu0 0.0
        %641 = vmatprep.subr.mxu0 0.0
        %642 = vmatpush2.msra.mxu0 0.0
        %643 = vmatprep.mubr.f32.mxu0 0.0
        %644 = vmatmul.mubr.f32.gmra.mxu0 %v406
        %v645 = vpop.f32.mrf.mxu0
        %v646 = vadd.f32 %v577, %v645
        %v647 = vpop.f32.mrf.mxu0
        %648 = vdwg.mxu0
        %v649 = vmax.f32 %v646, 0.0
        %v650 = vlaneseq
        %v651 = vshrl.u32 %v650, 7
        %v652 = vsub.s32 0, %v651
        %v653 = vrot.slane %v649, %v652
        %655 = vbcast.lane.b32.xlu0 %v653, 256
        %v656 = vpop.permute.xlu0 %655
        %s658 = sor.u32 256, 8
        %659 = vbcast.lane.b32.xlu0 %v653, %s658
        %v660 = vpop.permute.xlu0 %659
        %s662 = sor.u32 256, 16
        %663 = vbcast.lane.b32.xlu0 %v653, %s662
        %v664 = vpop.permute.xlu0 %663
        %s666 = sor.u32 256, 24
        %667 = vbcast.lane.b32.xlu0 %v653, %s666
        %v668 = vpop.permute.xlu0 %667
        %v669 = vlaneseq
        %v670 = vshrl.u32 %v669, 7
        %v671 = vsub.s32 1, %v670
        %v672 = vrot.slane %v649, %v671
        %674 = vbcast.lane.b32.xlu0 %v672, 256
        %v675 = vpop.permute.xlu0 %674
        %s677 = sor.u32 256, 8
        %678 = vbcast.lane.b32.xlu0 %v672, %s677
        %v679 = vpop.permute.xlu0 %678
        %s681 = sor.u32 256, 16
        %682 = vbcast.lane.b32.xlu0 %v672, %s681
        %v683 = vpop.permute.xlu0 %682
        %s685 = sor.u32 256, 24
        %686 = vbcast.lane.b32.xlu0 %v672, %s685
        %v687 = vpop.permute.xlu0 %686
        %v688 = vlaneseq
        %v689 = vshrl.u32 %v688, 7
        %v690 = vsub.s32 2, %v689
        %v691 = vrot.slane %v649, %v690
        %693 = vbcast.lane.b32.xlu0 %v691, 256
        %v694 = vpop.permute.xlu0 %693
        %s696 = sor.u32 256, 8
        %697 = vbcast.lane.b32.xlu0 %v691, %s696
        %v698 = vpop.permute.xlu0 %697
        %s700 = sor.u32 256, 16
        %701 = vbcast.lane.b32.xlu0 %v691, %s700
        %v702 = vpop.permute.xlu0 %701
        %s704 = sor.u32 256, 24
        %705 = vbcast.lane.b32.xlu0 %v691, %s704
        %v706 = vpop.permute.xlu0 %705
        %v707 = vlaneseq
        %v708 = vshrl.u32 %v707, 7
        %v709 = vsub.s32 3, %v708
        %v710 = vrot.slane %v649, %v709
        %712 = vbcast.lane.b32.xlu0 %v710, 256
        %v713 = vpop.permute.xlu0 %712
        %s715 = sor.u32 256, 8
        %716 = vbcast.lane.b32.xlu0 %v710, %s715
        %v717 = vpop.permute.xlu0 %716
        %s719 = sor.u32 256, 16
        %720 = vbcast.lane.b32.xlu0 %v710, %s719
        %v721 = vpop.permute.xlu0 %720
        %s723 = sor.u32 256, 24
        %724 = vbcast.lane.b32.xlu0 %v710, %s723
        %v725 = vpop.permute.xlu0 %724
        %v726 = vlaneseq
        %v727 = vshrl.u32 %v726, 7
        %v728 = vsub.s32 4, %v727
        %v729 = vrot.slane %v649, %v728
        %731 = vbcast.lane.b32.xlu0 %v729, 256
        %v732 = vpop.permute.xlu0 %731
        %s734 = sor.u32 256, 8
        %735 = vbcast.lane.b32.xlu0 %v729, %s734
        %v736 = vpop.permute.xlu0 %735
        %s738 = sor.u32 256, 16
        %739 = vbcast.lane.b32.xlu0 %v729, %s738
        %v740 = vpop.permute.xlu0 %739
        %s742 = sor.u32 256, 24
        %743 = vbcast.lane.b32.xlu0 %v729, %s742
        %v744 = vpop.permute.xlu0 %743
        %v745 = vlaneseq
        %v746 = vshrl.u32 %v745, 7
        %v747 = vsub.s32 5, %v746
        %v748 = vrot.slane %v649, %v747
        %750 = vbcast.lane.b32.xlu0 %v748, 256
        %v751 = vpop.permute.xlu0 %750
        %s753 = sor.u32 256, 8
        %754 = vbcast.lane.b32.xlu0 %v748, %s753
        %v755 = vpop.permute.xlu0 %754
        %s757 = sor.u32 256, 16
        %758 = vbcast.lane.b32.xlu0 %v748, %s757
        %v759 = vpop.permute.xlu0 %758
        %s761 = sor.u32 256, 24
        %762 = vbcast.lane.b32.xlu0 %v748, %s761
        %v763 = vpop.permute.xlu0 %762
        %v764 = vlaneseq
        %v765 = vshrl.u32 %v764, 7
        %v766 = vsub.s32 6, %v765
        %v767 = vrot.slane %v649, %v766
        %769 = vbcast.lane.b32.xlu0 %v767, 256
        %v770 = vpop.permute.xlu0 %769
        %s772 = sor.u32 256, 8
        %773 = vbcast.lane.b32.xlu0 %v767, %s772
        %v774 = vpop.permute.xlu0 %773
        %s776 = sor.u32 256, 16
        %777 = vbcast.lane.b32.xlu0 %v767, %s776
        %v778 = vpop.permute.xlu0 %777
        %s780 = sor.u32 256, 24
        %781 = vbcast.lane.b32.xlu0 %v767, %s780
        %v782 = vpop.permute.xlu0 %781
        %v783 = vlaneseq
        %v784 = vshrl.u32 %v783, 7
        %v785 = vsub.s32 7, %v784
        %v786 = vrot.slane %v649, %v785
        %788 = vbcast.lane.b32.xlu0 %v786, 256
        %v789 = vpop.permute.xlu0 %788
        %s791 = sor.u32 256, 8
        %792 = vbcast.lane.b32.xlu0 %v786, %s791
        %v793 = vpop.permute.xlu0 %792
        %s795 = sor.u32 256, 16
        %796 = vbcast.lane.b32.xlu0 %v786, %s795
        %v797 = vpop.permute.xlu0 %796
        %s799 = sor.u32 256, 24
        %800 = vbcast.lane.b32.xlu0 %v786, %s799
        %v801 = vpop.permute.xlu0 %800
        %v803 = vcombine.high %v387, %v387
        %v805 = vunpack.c.l.s4 1966171168
        %v806 = vunpack.c.0.s8 %v805
        %v807 = vlaneseq
        %v808 = vshrl.u32 %v807, 7
        %v809 = vsub.s32 %v806, %v808
        %v810 = vrot.slane %v387, %v809
        %v812 = vunpack.c.l.s4 1966171168
        %v813 = vunpack.c.0.s8 %v812
        %v814 = vlaneseq
        %v815 = vshrl.u32 %v814, 7
        %v816 = vsub.s32 %v813, %v815
        %v817 = vrot.slane %v803, %v816
        %v818 = vcombine.high %v810, %v810
        %v819 = vcombine.high %v817, %v817
        %v821 = vunpack.c.l.s4 1966171168
        %v822 = vunpack.c.0.s8 %v821
        %v823 = vlaneseq
        %v824 = vshrl.u32 %v823, 7
        %v825 = vsub.s32 %v822, %v824
        %v826 = vrot.slane %v810, %v825
        %v828 = vunpack.c.l.s4 1966171168
        %v829 = vunpack.c.0.s8 %v828
        %v830 = vlaneseq
        %v831 = vshrl.u32 %v830, 7
        %v832 = vsub.s32 %v829, %v831
        %v833 = vrot.slane %v817, %v832
        %v835 = vunpack.c.l.s4 1966171168
        %v836 = vunpack.c.0.s8 %v835
        %v837 = vlaneseq
        %v838 = vshrl.u32 %v837, 7
        %v839 = vsub.s32 %v836, %v838
        %v840 = vrot.slane %v818, %v839
        %v842 = vunpack.c.l.s4 1966171168
        %v843 = vunpack.c.0.s8 %v842
        %v844 = vlaneseq
        %v845 = vshrl.u32 %v844, 7
        %v846 = vsub.s32 %v843, %v845
        %v847 = vrot.slane %v819, %v846
        %v848 = vcombine.high %v826, %v826
        %v849 = vcombine.high %v833, %v833
        %v850 = vcombine.high %v840, %v840
        %v851 = vcombine.high %v847, %v847
        %v852 = vlaneseq
        %v853 = vshrl.u32 %v852, 7
        %v854 = vsub.s32 0, %v853
        %v855 = vrot.slane %v826, %v854
        %v856 = vlaneseq
        %v857 = vshrl.u32 %v856, 7
        %v858 = vsub.s32 0, %v857
        %v859 = vrot.slane %v840, %v858
        %v860 = vlaneseq
        %v861 = vshrl.u32 %v860, 7
        %v862 = vsub.s32 0, %v861
        %v863 = vrot.slane %v848, %v862
        %v864 = vlaneseq
        %v865 = vshrl.u32 %v864, 7
        %v866 = vsub.s32 0, %v865
        %v867 = vrot.slane %v850, %v866
        %v868 = vlaneseq
        %v869 = vshrl.u32 %v868, 7
        %v870 = vsub.s32 0, %v869
        %v871 = vrot.slane %v833, %v870
        %v872 = vlaneseq
        %v873 = vshrl.u32 %v872, 7
        %v874 = vsub.s32 0, %v873
        %v875 = vrot.slane %v847, %v874
        %v876 = vlaneseq
        %v877 = vshrl.u32 %v876, 7
        %v878 = vsub.s32 0, %v877
        %v879 = vrot.slane %v849, %v878
        %v880 = vlaneseq
        %v881 = vshrl.u32 %v880, 7
        %v882 = vsub.s32 0, %v881
        %v883 = vrot.slane %v851, %v882
        %v892 = vmul.f32 %v656, %v855
        %v893 = vmul.f32 %v660, %v855
        %v894 = vmul.f32 %v664, %v855
        %v895 = vmul.f32 %v668, %v855
        %v896 = vmul.f32 %v675, %v859
        %v897 = vmul.f32 %v679, %v859
        %v898 = vmul.f32 %v683, %v859
        %v899 = vmul.f32 %v687, %v859
        %v900 = vmul.f32 %v694, %v863
        %v901 = vmul.f32 %v698, %v863
        %v902 = vmul.f32 %v702, %v863
        %v903 = vmul.f32 %v706, %v863
        %v904 = vmul.f32 %v713, %v867
        %v905 = vmul.f32 %v717, %v867
        %v906 = vmul.f32 %v721, %v867
        %v907 = vmul.f32 %v725, %v867
        %v908 = vmul.f32 %v732, %v871
        %v909 = vmul.f32 %v736, %v871
        %v910 = vmul.f32 %v740, %v871
        %v911 = vmul.f32 %v744, %v871
        %v912 = vmul.f32 %v751, %v875
        %v913 = vmul.f32 %v755, %v875
        %v914 = vmul.f32 %v759, %v875
        %v915 = vmul.f32 %v763, %v875
        %v916 = vmul.f32 %v770, %v879
        %v917 = vmul.f32 %v774, %v879
        %v918 = vmul.f32 %v778, %v879
        %v919 = vmul.f32 %v782, %v879
        %v920 = vmul.f32 %v789, %v883
        %v921 = vmul.f32 %v793, %v883
        %v922 = vmul.f32 %v797, %v883
        %v923 = vmul.f32 %v801, %v883
        %v924 = vcombine.low %v892, %v900
        %v925 = vcombine.high %v892, %v900
        %v927 = vunpack.c.l.s4 1983009808
        %v928 = vunpack.c.0.s8 %v927
        %v929 = vlaneseq
        %v930 = vshrl.u32 %v929, 7
        %v931 = vsub.s32 %v928, %v930
        %v932 = vrot.slane %v924, %v931
        %v934 = vunpack.c.l.s4 1983009808
        %v935 = vunpack.c.0.s8 %v934
        %v936 = vlaneseq
        %v937 = vshrl.u32 %v936, 7
        %v938 = vsub.s32 %v935, %v937
        %v939 = vrot.slane %v925, %v938
        %v940 = vcombine.low %v896, %v904
        %v941 = vcombine.high %v896, %v904
        %v943 = vunpack.c.l.s4 1983009808
        %v944 = vunpack.c.0.s8 %v943
        %v945 = vlaneseq
        %v946 = vshrl.u32 %v945, 7
        %v947 = vsub.s32 %v944, %v946
        %v948 = vrot.slane %v940, %v947
        %v950 = vunpack.c.l.s4 1983009808
        %v951 = vunpack.c.0.s8 %v950
        %v952 = vlaneseq
        %v953 = vshrl.u32 %v952, 7
        %v954 = vsub.s32 %v951, %v953
        %v955 = vrot.slane %v941, %v954
        %v956 = vcombine.low %v908, %v916
        %v957 = vcombine.high %v908, %v916
        %v959 = vunpack.c.l.s4 1983009808
        %v960 = vunpack.c.0.s8 %v959
        %v961 = vlaneseq
        %v962 = vshrl.u32 %v961, 7
        %v963 = vsub.s32 %v960, %v962
        %v964 = vrot.slane %v956, %v963
        %v966 = vunpack.c.l.s4 1983009808
        %v967 = vunpack.c.0.s8 %v966
        %v968 = vlaneseq
        %v969 = vshrl.u32 %v968, 7
        %v970 = vsub.s32 %v967, %v969
        %v971 = vrot.slane %v957, %v970
        %v972 = vcombine.low %v912, %v920
        %v973 = vcombine.high %v912, %v920
        %v975 = vunpack.c.l.s4 1983009808
        %v976 = vunpack.c.0.s8 %v975
        %v977 = vlaneseq
        %v978 = vshrl.u32 %v977, 7
        %v979 = vsub.s32 %v976, %v978
        %v980 = vrot.slane %v972, %v979
        %v982 = vunpack.c.l.s4 1983009808
        %v983 = vunpack.c.0.s8 %v982
        %v984 = vlaneseq
        %v985 = vshrl.u32 %v984, 7
        %v986 = vsub.s32 %v983, %v985
        %v987 = vrot.slane %v973, %v986
        %v988 = vcombine.low %v932, %v948
        %v989 = vcombine.high %v932, %v948
        %v991 = vunpack.c.l.s4 1934713408
        %v992 = vunpack.c.0.s8 %v991
        %v993 = vlaneseq
        %v994 = vshrl.u32 %v993, 7
        %v995 = vsub.s32 %v992, %v994
        %v996 = vrot.slane %v988, %v995
        %v998 = vunpack.c.l.s4 1934713408
        %v999 = vunpack.c.0.s8 %v998
        %v1000 = vlaneseq
        %v1001 = vshrl.u32 %v1000, 7
        %v1002 = vsub.s32 %v999, %v1001
        %v1003 = vrot.slane %v989, %v1002
        %v1004 = vcombine.low %v939, %v955
        %v1005 = vcombine.high %v939, %v955
        %v1007 = vunpack.c.l.s4 1934713408
        %v1008 = vunpack.c.0.s8 %v1007
        %v1009 = vlaneseq
        %v1010 = vshrl.u32 %v1009, 7
        %v1011 = vsub.s32 %v1008, %v1010
        %v1012 = vrot.slane %v1004, %v1011
        %v1014 = vunpack.c.l.s4 1934713408
        %v1015 = vunpack.c.0.s8 %v1014
        %v1016 = vlaneseq
        %v1017 = vshrl.u32 %v1016, 7
        %v1018 = vsub.s32 %v1015, %v1017
        %v1019 = vrot.slane %v1005, %v1018
        %v1020 = vcombine.low %v964, %v980
        %v1021 = vcombine.high %v964, %v980
        %v1023 = vunpack.c.l.s4 1934713408
        %v1024 = vunpack.c.0.s8 %v1023
        %v1025 = vlaneseq
        %v1026 = vshrl.u32 %v1025, 7
        %v1027 = vsub.s32 %v1024, %v1026
        %v1028 = vrot.slane %v1020, %v1027
        %v1030 = vunpack.c.l.s4 1934713408
        %v1031 = vunpack.c.0.s8 %v1030
        %v1032 = vlaneseq
        %v1033 = vshrl.u32 %v1032, 7
        %v1034 = vsub.s32 %v1031, %v1033
        %v1035 = vrot.slane %v1021, %v1034
        %v1036 = vcombine.low %v971, %v987
        %v1037 = vcombine.high %v971, %v987
        %v1039 = vunpack.c.l.s4 1934713408
        %v1040 = vunpack.c.0.s8 %v1039
        %v1041 = vlaneseq
        %v1042 = vshrl.u32 %v1041, 7
        %v1043 = vsub.s32 %v1040, %v1042
        %v1044 = vrot.slane %v1036, %v1043
        %v1046 = vunpack.c.l.s4 1934713408
        %v1047 = vunpack.c.0.s8 %v1046
        %v1048 = vlaneseq
        %v1049 = vshrl.u32 %v1048, 7
        %v1050 = vsub.s32 %v1047, %v1049
        %v1051 = vrot.slane %v1037, %v1050
        %v1052 = vcombine.low %v996, %v1028
        %v1053 = vcombine.high %v996, %v1028
        %v1054 = vcombine.low %v1003, %v1035
        %v1055 = vcombine.high %v1003, %v1035
        %v1056 = vcombine.low %v1012, %v1044
        %v1057 = vcombine.high %v1012, %v1044
        %v1058 = vcombine.low %v1019, %v1051
        %v1059 = vcombine.high %v1019, %v1051
        %v1060 = vcombine.low %v893, %v901
        %v1061 = vcombine.high %v893, %v901
        %v1063 = vunpack.c.l.s4 1983009808
        %v1064 = vunpack.c.0.s8 %v1063
        %v1065 = vlaneseq
        %v1066 = vshrl.u32 %v1065, 7
        %v1067 = vsub.s32 %v1064, %v1066
        %v1068 = vrot.slane %v1060, %v1067
        %v1070 = vunpack.c.l.s4 1983009808
        %v1071 = vunpack.c.0.s8 %v1070
        %v1072 = vlaneseq
        %v1073 = vshrl.u32 %v1072, 7
        %v1074 = vsub.s32 %v1071, %v1073
        %v1075 = vrot.slane %v1061, %v1074
        %v1076 = vcombine.low %v897, %v905
        %v1077 = vcombine.high %v897, %v905
        %v1079 = vunpack.c.l.s4 1983009808
        %v1080 = vunpack.c.0.s8 %v1079
        %v1081 = vlaneseq
        %v1082 = vshrl.u32 %v1081, 7
        %v1083 = vsub.s32 %v1080, %v1082
        %v1084 = vrot.slane %v1076, %v1083
        %v1086 = vunpack.c.l.s4 1983009808
        %v1087 = vunpack.c.0.s8 %v1086
        %v1088 = vlaneseq
        %v1089 = vshrl.u32 %v1088, 7
        %v1090 = vsub.s32 %v1087, %v1089
        %v1091 = vrot.slane %v1077, %v1090
        %v1092 = vcombine.low %v909, %v917
        %v1093 = vcombine.high %v909, %v917
        %v1095 = vunpack.c.l.s4 1983009808
        %v1096 = vunpack.c.0.s8 %v1095
        %v1097 = vlaneseq
        %v1098 = vshrl.u32 %v1097, 7
        %v1099 = vsub.s32 %v1096, %v1098
        %v1100 = vrot.slane %v1092, %v1099
        %v1102 = vunpack.c.l.s4 1983009808
        %v1103 = vunpack.c.0.s8 %v1102
        %v1104 = vlaneseq
        %v1105 = vshrl.u32 %v1104, 7
        %v1106 = vsub.s32 %v1103, %v1105
        %v1107 = vrot.slane %v1093, %v1106
        %v1108 = vcombine.low %v913, %v921
        %v1109 = vcombine.high %v913, %v921
        %v1111 = vunpack.c.l.s4 1983009808
        %v1112 = vunpack.c.0.s8 %v1111
        %v1113 = vlaneseq
        %v1114 = vshrl.u32 %v1113, 7
        %v1115 = vsub.s32 %v1112, %v1114
        %v1116 = vrot.slane %v1108, %v1115
        %v1118 = vunpack.c.l.s4 1983009808
        %v1119 = vunpack.c.0.s8 %v1118
        %v1120 = vlaneseq
        %v1121 = vshrl.u32 %v1120, 7
        %v1122 = vsub.s32 %v1119, %v1121
        %v1123 = vrot.slane %v1109, %v1122
        %v1124 = vcombine.low %v1068, %v1084
        %v1125 = vcombine.high %v1068, %v1084
        %v1127 = vunpack.c.l.s4 1934713408
        %v1128 = vunpack.c.0.s8 %v1127
        %v1129 = vlaneseq
        %v1130 = vshrl.u32 %v1129, 7
        %v1131 = vsub.s32 %v1128, %v1130
        %v1132 = vrot.slane %v1124, %v1131
        %v1134 = vunpack.c.l.s4 1934713408
        %v1135 = vunpack.c.0.s8 %v1134
        %v1136 = vlaneseq
        %v1137 = vshrl.u32 %v1136, 7
        %v1138 = vsub.s32 %v1135, %v1137
        %v1139 = vrot.slane %v1125, %v1138
        %v1140 = vcombine.low %v1075, %v1091
        %v1141 = vcombine.high %v1075, %v1091
        %v1143 = vunpack.c.l.s4 1934713408
        %v1144 = vunpack.c.0.s8 %v1143
        %v1145 = vlaneseq
        %v1146 = vshrl.u32 %v1145, 7
        %v1147 = vsub.s32 %v1144, %v1146
        %v1148 = vrot.slane %v1140, %v1147
        %v1150 = vunpack.c.l.s4 1934713408
        %v1151 = vunpack.c.0.s8 %v1150
        %v1152 = vlaneseq
        %v1153 = vshrl.u32 %v1152, 7
        %v1154 = vsub.s32 %v1151, %v1153
        %v1155 = vrot.slane %v1141, %v1154
        %v1156 = vcombine.low %v1100, %v1116
        %v1157 = vcombine.high %v1100, %v1116
        %v1159 = vunpack.c.l.s4 1934713408
        %v1160 = vunpack.c.0.s8 %v1159
        %v1161 = vlaneseq
        %v1162 = vshrl.u32 %v1161, 7
        %v1163 = vsub.s32 %v1160, %v1162
        %v1164 = vrot.slane %v1156, %v1163
        %v1166 = vunpack.c.l.s4 1934713408
        %v1167 = vunpack.c.0.s8 %v1166
        %v1168 = vlaneseq
        %v1169 = vshrl.u32 %v1168, 7
        %v1170 = vsub.s32 %v1167, %v1169
        %v1171 = vrot.slane %v1157, %v1170
        %v1172 = vcombine.low %v1107, %v1123
        %v1173 = vcombine.high %v1107, %v1123
        %v1175 = vunpack.c.l.s4 1934713408
        %v1176 = vunpack.c.0.s8 %v1175
        %v1177 = vlaneseq
        %v1178 = vshrl.u32 %v1177, 7
        %v1179 = vsub.s32 %v1176, %v1178
        %v1180 = vrot.slane %v1172, %v1179
        %v1182 = vunpack.c.l.s4 1934713408
        %v1183 = vunpack.c.0.s8 %v1182
        %v1184 = vlaneseq
        %v1185 = vshrl.u32 %v1184, 7
        %v1186 = vsub.s32 %v1183, %v1185
        %v1187 = vrot.slane %v1173, %v1186
        %v1188 = vcombine.low %v1132, %v1164
        %v1189 = vcombine.high %v1132, %v1164
        %v1190 = vcombine.low %v1139, %v1171
        %v1191 = vcombine.high %v1139, %v1171
        %v1192 = vcombine.low %v1148, %v1180
        %v1193 = vcombine.high %v1148, %v1180
        %v1194 = vcombine.low %v1155, %v1187
        %v1195 = vcombine.high %v1155, %v1187
        %v1196 = vcombine.low %v894, %v902
        %v1197 = vcombine.high %v894, %v902
        %v1199 = vunpack.c.l.s4 1983009808
        %v1200 = vunpack.c.0.s8 %v1199
        %v1201 = vlaneseq
        %v1202 = vshrl.u32 %v1201, 7
        %v1203 = vsub.s32 %v1200, %v1202
        %v1204 = vrot.slane %v1196, %v1203
        %v1206 = vunpack.c.l.s4 1983009808
        %v1207 = vunpack.c.0.s8 %v1206
        %v1208 = vlaneseq
        %v1209 = vshrl.u32 %v1208, 7
        %v1210 = vsub.s32 %v1207, %v1209
        %v1211 = vrot.slane %v1197, %v1210
        %v1212 = vcombine.low %v898, %v906
        %v1213 = vcombine.high %v898, %v906
        %v1215 = vunpack.c.l.s4 1983009808
        %v1216 = vunpack.c.0.s8 %v1215
        %v1217 = vlaneseq
        %v1218 = vshrl.u32 %v1217, 7
        %v1219 = vsub.s32 %v1216, %v1218
        %v1220 = vrot.slane %v1212, %v1219
        %v1222 = vunpack.c.l.s4 1983009808
        %v1223 = vunpack.c.0.s8 %v1222
        %v1224 = vlaneseq
        %v1225 = vshrl.u32 %v1224, 7
        %v1226 = vsub.s32 %v1223, %v1225
        %v1227 = vrot.slane %v1213, %v1226
        %v1228 = vcombine.low %v910, %v918
        %v1229 = vcombine.high %v910, %v918
        %v1231 = vunpack.c.l.s4 1983009808
        %v1232 = vunpack.c.0.s8 %v1231
        %v1233 = vlaneseq
        %v1234 = vshrl.u32 %v1233, 7
        %v1235 = vsub.s32 %v1232, %v1234
        %v1236 = vrot.slane %v1228, %v1235
        %v1238 = vunpack.c.l.s4 1983009808
        %v1239 = vunpack.c.0.s8 %v1238
        %v1240 = vlaneseq
        %v1241 = vshrl.u32 %v1240, 7
        %v1242 = vsub.s32 %v1239, %v1241
        %v1243 = vrot.slane %v1229, %v1242
        %v1244 = vcombine.low %v914, %v922
        %v1245 = vcombine.high %v914, %v922
        %v1247 = vunpack.c.l.s4 1983009808
        %v1248 = vunpack.c.0.s8 %v1247
        %v1249 = vlaneseq
        %v1250 = vshrl.u32 %v1249, 7
        %v1251 = vsub.s32 %v1248, %v1250
        %v1252 = vrot.slane %v1244, %v1251
        %v1254 = vunpack.c.l.s4 1983009808
        %v1255 = vunpack.c.0.s8 %v1254
        %v1256 = vlaneseq
        %v1257 = vshrl.u32 %v1256, 7
        %v1258 = vsub.s32 %v1255, %v1257
        %v1259 = vrot.slane %v1245, %v1258
        %v1260 = vcombine.low %v1204, %v1220
        %v1261 = vcombine.high %v1204, %v1220
        %v1263 = vunpack.c.l.s4 1934713408
        %v1264 = vunpack.c.0.s8 %v1263
        %v1265 = vlaneseq
        %v1266 = vshrl.u32 %v1265, 7
        %v1267 = vsub.s32 %v1264, %v1266
        %v1268 = vrot.slane %v1260, %v1267
        %v1270 = vunpack.c.l.s4 1934713408
        %v1271 = vunpack.c.0.s8 %v1270
        %v1272 = vlaneseq
        %v1273 = vshrl.u32 %v1272, 7
        %v1274 = vsub.s32 %v1271, %v1273
        %v1275 = vrot.slane %v1261, %v1274
        %v1276 = vcombine.low %v1211, %v1227
        %v1277 = vcombine.high %v1211, %v1227
        %v1279 = vunpack.c.l.s4 1934713408
        %v1280 = vunpack.c.0.s8 %v1279
        %v1281 = vlaneseq
        %v1282 = vshrl.u32 %v1281, 7
        %v1283 = vsub.s32 %v1280, %v1282
        %v1284 = vrot.slane %v1276, %v1283
        %v1286 = vunpack.c.l.s4 1934713408
        %v1287 = vunpack.c.0.s8 %v1286
        %v1288 = vlaneseq
        %v1289 = vshrl.u32 %v1288, 7
        %v1290 = vsub.s32 %v1287, %v1289
        %v1291 = vrot.slane %v1277, %v1290
        %v1292 = vcombine.low %v1236, %v1252
        %v1293 = vcombine.high %v1236, %v1252
        %v1295 = vunpack.c.l.s4 1934713408
        %v1296 = vunpack.c.0.s8 %v1295
        %v1297 = vlaneseq
        %v1298 = vshrl.u32 %v1297, 7
        %v1299 = vsub.s32 %v1296, %v1298
        %v1300 = vrot.slane %v1292, %v1299
        %v1302 = vunpack.c.l.s4 1934713408
        %v1303 = vunpack.c.0.s8 %v1302
        %v1304 = vlaneseq
        %v1305 = vshrl.u32 %v1304, 7
        %v1306 = vsub.s32 %v1303, %v1305
        %v1307 = vrot.slane %v1293, %v1306
        %v1308 = vcombine.low %v1243, %v1259
        %v1309 = vcombine.high %v1243, %v1259
        %v1311 = vunpack.c.l.s4 1934713408
        %v1312 = vunpack.c.0.s8 %v1311
        %v1313 = vlaneseq
        %v1314 = vshrl.u32 %v1313, 7
        %v1315 = vsub.s32 %v1312, %v1314
        %v1316 = vrot.slane %v1308, %v1315
        %v1318 = vunpack.c.l.s4 1934713408
        %v1319 = vunpack.c.0.s8 %v1318
        %v1320 = vlaneseq
        %v1321 = vshrl.u32 %v1320, 7
        %v1322 = vsub.s32 %v1319, %v1321
        %v1323 = vrot.slane %v1309, %v1322
        %v1324 = vcombine.low %v1268, %v1300
        %v1325 = vcombine.high %v1268, %v1300
        %v1326 = vcombine.low %v1275, %v1307
        %v1327 = vcombine.high %v1275, %v1307
        %v1328 = vcombine.low %v1284, %v1316
        %v1329 = vcombine.high %v1284, %v1316
        %v1330 = vcombine.low %v1291, %v1323
        %v1331 = vcombine.high %v1291, %v1323
        %v1332 = vcombine.low %v895, %v903
        %v1333 = vcombine.high %v895, %v903
        %v1335 = vunpack.c.l.s4 1983009808
        %v1336 = vunpack.c.0.s8 %v1335
        %v1337 = vlaneseq
        %v1338 = vshrl.u32 %v1337, 7
        %v1339 = vsub.s32 %v1336, %v1338
        %v1340 = vrot.slane %v1332, %v1339
        %v1342 = vunpack.c.l.s4 1983009808
        %v1343 = vunpack.c.0.s8 %v1342
        %v1344 = vlaneseq
        %v1345 = vshrl.u32 %v1344, 7
        %v1346 = vsub.s32 %v1343, %v1345
        %v1347 = vrot.slane %v1333, %v1346
        %v1348 = vcombine.low %v899, %v907
        %v1349 = vcombine.high %v899, %v907
        %v1351 = vunpack.c.l.s4 1983009808
        %v1352 = vunpack.c.0.s8 %v1351
        %v1353 = vlaneseq
        %v1354 = vshrl.u32 %v1353, 7
        %v1355 = vsub.s32 %v1352, %v1354
        %v1356 = vrot.slane %v1348, %v1355
        %v1358 = vunpack.c.l.s4 1983009808
        %v1359 = vunpack.c.0.s8 %v1358
        %v1360 = vlaneseq
        %v1361 = vshrl.u32 %v1360, 7
        %v1362 = vsub.s32 %v1359, %v1361
        %v1363 = vrot.slane %v1349, %v1362
        %v1364 = vcombine.low %v911, %v919
        %v1365 = vcombine.high %v911, %v919
        %v1367 = vunpack.c.l.s4 1983009808
        %v1368 = vunpack.c.0.s8 %v1367
        %v1369 = vlaneseq
        %v1370 = vshrl.u32 %v1369, 7
        %v1371 = vsub.s32 %v1368, %v1370
        %v1372 = vrot.slane %v1364, %v1371
        %v1374 = vunpack.c.l.s4 1983009808
        %v1375 = vunpack.c.0.s8 %v1374
        %v1376 = vlaneseq
        %v1377 = vshrl.u32 %v1376, 7
        %v1378 = vsub.s32 %v1375, %v1377
        %v1379 = vrot.slane %v1365, %v1378
        %v1380 = vcombine.low %v915, %v923
        %v1381 = vcombine.high %v915, %v923
        %v1383 = vunpack.c.l.s4 1983009808
        %v1384 = vunpack.c.0.s8 %v1383
        %v1385 = vlaneseq
        %v1386 = vshrl.u32 %v1385, 7
        %v1387 = vsub.s32 %v1384, %v1386
        %v1388 = vrot.slane %v1380, %v1387
        %v1390 = vunpack.c.l.s4 1983009808
        %v1391 = vunpack.c.0.s8 %v1390
        %v1392 = vlaneseq
        %v1393 = vshrl.u32 %v1392, 7
        %v1394 = vsub.s32 %v1391, %v1393
        %v1395 = vrot.slane %v1381, %v1394
        %v1396 = vcombine.low %v1340, %v1356
        %v1397 = vcombine.high %v1340, %v1356
        %v1399 = vunpack.c.l.s4 1934713408
        %v1400 = vunpack.c.0.s8 %v1399
        %v1401 = vlaneseq
        %v1402 = vshrl.u32 %v1401, 7
        %v1403 = vsub.s32 %v1400, %v1402
        %v1404 = vrot.slane %v1396, %v1403
        %v1406 = vunpack.c.l.s4 1934713408
        %v1407 = vunpack.c.0.s8 %v1406
        %v1408 = vlaneseq
        %v1409 = vshrl.u32 %v1408, 7
        %v1410 = vsub.s32 %v1407, %v1409
        %v1411 = vrot.slane %v1397, %v1410
        %v1412 = vcombine.low %v1347, %v1363
        %v1413 = vcombine.high %v1347, %v1363
        %v1415 = vunpack.c.l.s4 1934713408
        %v1416 = vunpack.c.0.s8 %v1415
        %v1417 = vlaneseq
        %v1418 = vshrl.u32 %v1417, 7
        %v1419 = vsub.s32 %v1416, %v1418
        %v1420 = vrot.slane %v1412, %v1419
        %v1422 = vunpack.c.l.s4 1934713408
        %v1423 = vunpack.c.0.s8 %v1422
        %v1424 = vlaneseq
        %v1425 = vshrl.u32 %v1424, 7
        %v1426 = vsub.s32 %v1423, %v1425
        %v1427 = vrot.slane %v1413, %v1426
        %v1428 = vcombine.low %v1372, %v1388
        %v1429 = vcombine.high %v1372, %v1388
        %v1431 = vunpack.c.l.s4 1934713408
        %v1432 = vunpack.c.0.s8 %v1431
        %v1433 = vlaneseq
        %v1434 = vshrl.u32 %v1433, 7
        %v1435 = vsub.s32 %v1432, %v1434
        %v1436 = vrot.slane %v1428, %v1435
        %v1438 = vunpack.c.l.s4 1934713408
        %v1439 = vunpack.c.0.s8 %v1438
        %v1440 = vlaneseq
        %v1441 = vshrl.u32 %v1440, 7
        %v1442 = vsub.s32 %v1439, %v1441
        %v1443 = vrot.slane %v1429, %v1442
        %v1444 = vcombine.low %v1379, %v1395
        %v1445 = vcombine.high %v1379, %v1395
        %v1447 = vunpack.c.l.s4 1934713408
        %v1448 = vunpack.c.0.s8 %v1447
        %v1449 = vlaneseq
        %v1450 = vshrl.u32 %v1449, 7
        %v1451 = vsub.s32 %v1448, %v1450
        %v1452 = vrot.slane %v1444, %v1451
        %v1454 = vunpack.c.l.s4 1934713408
        %v1455 = vunpack.c.0.s8 %v1454
        %v1456 = vlaneseq
        %v1457 = vshrl.u32 %v1456, 7
        %v1458 = vsub.s32 %v1455, %v1457
        %v1459 = vrot.slane %v1445, %v1458
        %v1460 = vcombine.low %v1404, %v1436
        %v1461 = vcombine.high %v1404, %v1436
        %v1462 = vcombine.low %v1411, %v1443
        %v1463 = vcombine.high %v1411, %v1443
        %v1464 = vcombine.low %v1420, %v1452
        %v1465 = vcombine.high %v1420, %v1452
        %v1466 = vcombine.low %v1427, %v1459
        %v1467 = vcombine.high %v1427, %v1459
        %1469 = vrot.lane.b32.xlu0 %v1053, 16
        %v1470 = vpop.permute.xlu0 %1469
        %1473 = vrot.lane.b32.xlu0 %v1054, 32
        %v1474 = vpop.permute.xlu0 %1473
        %1477 = vrot.lane.b32.xlu0 %v1055, 48
        %v1478 = vpop.permute.xlu0 %1477
        %1481 = vrot.lane.b32.xlu0 %v1056, 64
        %v1482 = vpop.permute.xlu0 %1481
        %1485 = vrot.lane.b32.xlu0 %v1057, 80
        %v1486 = vpop.permute.xlu0 %1485
        %1489 = vrot.lane.b32.xlu0 %v1058, 96
        %v1490 = vpop.permute.xlu0 %1489
        %1493 = vrot.lane.b32.xlu0 %v1059, 112
        %v1494 = vpop.permute.xlu0 %1493
        %1497 = vrot.lane.b32.xlu0 %v1189, 16
        %v1498 = vpop.permute.xlu0 %1497
        %1501 = vrot.lane.b32.xlu0 %v1190, 32
        %v1502 = vpop.permute.xlu0 %1501
        %1505 = vrot.lane.b32.xlu0 %v1191, 48
        %v1506 = vpop.permute.xlu0 %1505
        %1509 = vrot.lane.b32.xlu0 %v1192, 64
        %v1510 = vpop.permute.xlu0 %1509
        %1513 = vrot.lane.b32.xlu0 %v1193, 80
        %v1514 = vpop.permute.xlu0 %1513
        %1517 = vrot.lane.b32.xlu0 %v1194, 96
        %v1518 = vpop.permute.xlu0 %1517
        %1521 = vrot.lane.b32.xlu0 %v1195, 112
        %v1522 = vpop.permute.xlu0 %1521
        %1525 = vrot.lane.b32.xlu0 %v1325, 16
        %v1526 = vpop.permute.xlu0 %1525
        %1529 = vrot.lane.b32.xlu0 %v1326, 32
        %v1530 = vpop.permute.xlu0 %1529
        %1533 = vrot.lane.b32.xlu0 %v1327, 48
        %v1534 = vpop.permute.xlu0 %1533
        %1537 = vrot.lane.b32.xlu0 %v1328, 64
        %v1538 = vpop.permute.xlu0 %1537
        %1541 = vrot.lane.b32.xlu0 %v1329, 80
        %v1542 = vpop.permute.xlu0 %1541
        %1545 = vrot.lane.b32.xlu0 %v1330, 96
        %v1546 = vpop.permute.xlu0 %1545
        %1549 = vrot.lane.b32.xlu0 %v1331, 112
        %v1550 = vpop.permute.xlu0 %1549
        %1553 = vrot.lane.b32.xlu0 %v1461, 16
        %v1554 = vpop.permute.xlu0 %1553
        %1557 = vrot.lane.b32.xlu0 %v1462, 32
        %v1558 = vpop.permute.xlu0 %1557
        %1561 = vrot.lane.b32.xlu0 %v1463, 48
        %v1562 = vpop.permute.xlu0 %1561
        %1565 = vrot.lane.b32.xlu0 %v1464, 64
        %v1566 = vpop.permute.xlu0 %1565
        %1569 = vrot.lane.b32.xlu0 %v1465, 80
        %v1570 = vpop.permute.xlu0 %1569
        %1573 = vrot.lane.b32.xlu0 %v1466, 96
        %v1574 = vpop.permute.xlu0 %1573
        %1577 = vrot.lane.b32.xlu0 %v1467, 112
        %v1578 = vpop.permute.xlu0 %1577
        %vm1580 = vcmask 130048
        %v1581 = vsel %vm1580, %v1052, %v1470
        %v1582 = vsel %vm490, %v1581, %v1474
        %vm1583 = vcmask 392192
        %v1584 = vsel %vm1583, %v1582, %v1478
        %v1585 = vsel %vm404, %v1584, %v1482
        %vm1586 = vcmask 654336
        %v1587 = vsel %vm1586, %v1585, %v1486
        %vm1588 = vcmask 785408
        %v1589 = vsel %vm1588, %v1587, %v1490
        %vm1590 = vcmask 916480
        %v1591 = vsel %vm1590, %v1589, %v1494
        %v1592 = vsel %vm1580, %v1188, %v1498
        %v1593 = vsel %vm490, %v1592, %v1502
        %v1594 = vsel %vm1583, %v1593, %v1506
        %v1595 = vsel %vm404, %v1594, %v1510
        %v1596 = vsel %vm1586, %v1595, %v1514
        %v1597 = vsel %vm1588, %v1596, %v1518
        %v1598 = vsel %vm1590, %v1597, %v1522
        %v1599 = vsel %vm1580, %v1324, %v1526
        %v1600 = vsel %vm490, %v1599, %v1530
        %v1601 = vsel %vm1583, %v1600, %v1534
        %v1602 = vsel %vm404, %v1601, %v1538
        %v1603 = vsel %vm1586, %v1602, %v1542
        %v1604 = vsel %vm1588, %v1603, %v1546
        %v1605 = vsel %vm1590, %v1604, %v1550
        %v1606 = vsel %vm1580, %v1460, %v1554
        %v1607 = vsel %vm490, %v1606, %v1558
        %v1608 = vsel %vm1583, %v1607, %v1562
        %v1609 = vsel %vm404, %v1608, %v1566
        %v1610 = vsel %vm1586, %v1609, %v1570
        %v1611 = vsel %vm1588, %v1610, %v1574
        %v1612 = vsel %vm1590, %v1611, %v1578
        %v1613 = vld [vmem:[#allocation2] sm:$0xff]
        %v1614 = vld [vmem:[#allocation2 + $0x8] sm:$0xff]
        %v1615 = vld [vmem:[#allocation2 + $0x10] sm:$0xff]
        %v1616 = vld [vmem:[#allocation2 + $0x18] sm:$0xff]
        %v1617 = vld [vmem:[#allocation2 + $0x20] sm:$0xff]
        %v1618 = vld [vmem:[#allocation2 + $0x28] sm:$0xff]
        %v1619 = vld [vmem:[#allocation2 + $0x30] sm:$0xff]
        %v1620 = vld [vmem:[#allocation2 + $0x38] sm:$0xff]
        %v1621 = vld [vmem:[#allocation2 + $0x40] sm:$0xff]
        %v1622 = vld [vmem:[#allocation2 + $0x48] sm:$0xff]
        %v1623 = vld [vmem:[#allocation2 + $0x50] sm:$0xff]
        %v1624 = vld [vmem:[#allocation2 + $0x58] sm:$0xff]
        %v1625 = vld [vmem:[#allocation2 + $0x60] sm:$0xff]
        %v1626 = vld [vmem:[#allocation2 + $0x68] sm:$0xff]
        %v1627 = vld [vmem:[#allocation2 + $0x70] sm:$0xff]
        %v1628 = vld [vmem:[#allocation2 + $0x78] sm:$0xff]
        %v1629 = vld [vmem:[#allocation2 + $0x80] sm:$0xff]
        %v1630 = vld [vmem:[#allocation2 + $0x88] sm:$0xff]
        %v1631 = vld [vmem:[#allocation2 + $0x90] sm:$0xff]
        %v1632 = vld [vmem:[#allocation2 + $0x98] sm:$0xff]
        %v1633 = vld [vmem:[#allocation2 + $0xa0] sm:$0xff]
        %v1634 = vld [vmem:[#allocation2 + $0xa8] sm:$0xff]
        %v1635 = vld [vmem:[#allocation2 + $0xb0] sm:$0xff]
        %v1636 = vld [vmem:[#allocation2 + $0xb8] sm:$0xff]
        %v1637 = vld [vmem:[#allocation2 + $0xc0] sm:$0xff]
        %v1638 = vld [vmem:[#allocation2 + $0xc8] sm:$0xff]
        %v1639 = vld [vmem:[#allocation2 + $0xd0] sm:$0xff]
        %v1640 = vld [vmem:[#allocation2 + $0xd8] sm:$0xff]
        %v1641 = vld [vmem:[#allocation2 + $0xe0] sm:$0xff]
        %v1642 = vld [vmem:[#allocation2 + $0xe8] sm:$0xff]
        %v1643 = vld [vmem:[#allocation2 + $0xf0] sm:$0xff]
        %v1644 = vld [vmem:[#allocation2 + $0xf8] sm:$0xff]
        %v1645 = vld [vmem:[#allocation2 + $0x100] sm:$0xff]
        %v1646 = vld [vmem:[#allocation2 + $0x108] sm:$0xff]
        %v1647 = vld [vmem:[#allocation2 + $0x110] sm:$0xff]
        %v1648 = vld [vmem:[#allocation2 + $0x118] sm:$0xff]
        %v1649 = vld [vmem:[#allocation2 + $0x120] sm:$0xff]
        %v1650 = vld [vmem:[#allocation2 + $0x128] sm:$0xff]
        %v1651 = vld [vmem:[#allocation2 + $0x130] sm:$0xff]
        %v1652 = vld [vmem:[#allocation2 + $0x138] sm:$0xff]
        %v1653 = vld [vmem:[#allocation2 + $0x140] sm:$0xff]
        %v1654 = vld [vmem:[#allocation2 + $0x148] sm:$0xff]
        %v1655 = vld [vmem:[#allocation2 + $0x150] sm:$0xff]
        %v1656 = vld [vmem:[#allocation2 + $0x158] sm:$0xff]
        %v1657 = vld [vmem:[#allocation2 + $0x160] sm:$0xff]
        %v1658 = vld [vmem:[#allocation2 + $0x168] sm:$0xff]
        %v1659 = vld [vmem:[#allocation2 + $0x170] sm:$0xff]
        %v1660 = vld [vmem:[#allocation2 + $0x178] sm:$0xff]
        %v1661 = vld [vmem:[#allocation2 + $0x180] sm:$0xff]
        %v1662 = vld [vmem:[#allocation2 + $0x188] sm:$0xff]
        %v1663 = vld [vmem:[#allocation2 + $0x190] sm:$0xff]
        %v1664 = vld [vmem:[#allocation2 + $0x198] sm:$0xff]
        %v1665 = vld [vmem:[#allocation2 + $0x1a0] sm:$0xff]
        %v1666 = vld [vmem:[#allocation2 + $0x1a8] sm:$0xff]
        %v1667 = vld [vmem:[#allocation2 + $0x1b0] sm:$0xff]
        %v1668 = vld [vmem:[#allocation2 + $0x1b8] sm:$0xff]
        %v1669 = vld [vmem:[#allocation2 + $0x1c0] sm:$0xff]
        %v1670 = vld [vmem:[#allocation2 + $0x1c8] sm:$0xff]
        %v1671 = vld [vmem:[#allocation2 + $0x1d0] sm:$0xff]
        %v1672 = vld [vmem:[#allocation2 + $0x1d8] sm:$0xff]
        %v1673 = vld [vmem:[#allocation2 + $0x1e0] sm:$0xff]
        %v1674 = vld [vmem:[#allocation2 + $0x1e8] sm:$0xff]
        %v1675 = vld [vmem:[#allocation2 + $0x1f0] sm:$0xff]
        %v1676 = vld [vmem:[#allocation2 + $0x1f8] sm:$0xff]
        %1677 = vmatprep.subr.mxu0 0.0
        %1678 = vmatpush1.msra.mxu0 %v1628
        %1679 = vmatprep.subr.mxu0 0.0
        %1680 = vmatpush1.msra.mxu0 %v1627
        %1681 = vmatprep.subr.mxu0 0.0
        %1682 = vmatpush1.msra.mxu0 %v1626
        %1683 = vmatprep.subr.mxu0 0.0
        %1684 = vmatpush1.msra.mxu0 %v1625
        %1685 = vmatprep.subr.mxu0 0.0
        %1686 = vmatpush1.msra.mxu0 %v1624
        %1687 = vmatprep.subr.mxu0 0.0
        %1688 = vmatpush1.msra.mxu0 %v1623
        %1689 = vmatprep.subr.mxu0 0.0
        %1690 = vmatpush1.msra.mxu0 %v1622
        %1691 = vmatprep.subr.mxu0 0.0
        %1692 = vmatpush1.msra.mxu0 %v1621
        %1693 = vmatprep.subr.mxu0 0.0
        %1694 = vmatpush1.msra.mxu0 %v1620
        %1695 = vmatprep.subr.mxu0 0.0
        %1696 = vmatpush1.msra.mxu0 %v1619
        %1697 = vmatprep.subr.mxu0 0.0
        %1698 = vmatpush1.msra.mxu0 %v1618
        %1699 = vmatprep.subr.mxu0 0.0
        %1700 = vmatpush1.msra.mxu0 %v1617
        %1701 = vmatprep.subr.mxu0 0.0
        %1702 = vmatpush1.msra.mxu0 %v1616
        %1703 = vmatprep.subr.mxu0 0.0
        %1704 = vmatpush1.msra.mxu0 %v1615
        %1705 = vmatprep.subr.mxu0 0.0
        %1706 = vmatpush1.msra.mxu0 %v1614
        %1707 = vmatprep.subr.mxu0 0.0
        %1708 = vmatpush1.msra.mxu0 %v1613
        %1709 = vmatprep.subr.mxu0 0.0
        %1710 = vmatpush2.msra.mxu0 %v1644
        %1711 = vmatprep.subr.mxu0 0.0
        %1712 = vmatpush2.msra.mxu0 %v1643
        %1713 = vmatprep.subr.mxu0 0.0
        %1714 = vmatpush2.msra.mxu0 %v1642
        %1715 = vmatprep.subr.mxu0 0.0
        %1716 = vmatpush2.msra.mxu0 %v1641
        %1717 = vmatprep.subr.mxu0 0.0
        %1718 = vmatpush2.msra.mxu0 %v1640
        %1719 = vmatprep.subr.mxu0 0.0
        %1720 = vmatpush2.msra.mxu0 %v1639
        %1721 = vmatprep.subr.mxu0 0.0
        %1722 = vmatpush2.msra.mxu0 %v1638
        %1723 = vmatprep.subr.mxu0 0.0
        %1724 = vmatpush2.msra.mxu0 %v1637
        %1725 = vmatprep.subr.mxu0 0.0
        %1726 = vmatpush2.msra.mxu0 %v1636
        %1727 = vmatprep.subr.mxu0 0.0
        %1728 = vmatpush2.msra.mxu0 %v1635
        %1729 = vmatprep.subr.mxu0 0.0
        %1730 = vmatpush2.msra.mxu0 %v1634
        %1731 = vmatprep.subr.mxu0 0.0
        %1732 = vmatpush2.msra.mxu0 %v1633
        %1733 = vmatprep.subr.mxu0 0.0
        %1734 = vmatpush2.msra.mxu0 %v1632
        %1735 = vmatprep.subr.mxu0 0.0
        %1736 = vmatpush2.msra.mxu0 %v1631
        %1737 = vmatprep.subr.mxu0 0.0
        %1738 = vmatpush2.msra.mxu0 %v1630
        %1739 = vmatprep.subr.mxu0 0.0
        %1740 = vmatpush2.msra.mxu0 %v1629
        %1741 = vmatprep.mubr.f32.mxu0 %v1598
        %1742 = vmatmul.mubr.f32.gmra.mxu0 %v1591
        %v1743 = vpop.f32.mrf.mxu0
        %v1744 = vadd.f32 0.0, %v1743
        %v1745 = vpop.f32.mrf.mxu0
        %1746 = vdwg.mxu0
        %1747 = vmatprep.subr.mxu0 0.0
        %1748 = vmatpush1.msra.mxu0 %v1660
        %1749 = vmatprep.subr.mxu0 0.0
        %1750 = vmatpush1.msra.mxu0 %v1659
        %1751 = vmatprep.subr.mxu0 0.0
        %1752 = vmatpush1.msra.mxu0 %v1658
        %1753 = vmatprep.subr.mxu0 0.0
        %1754 = vmatpush1.msra.mxu0 %v1657
        %1755 = vmatprep.subr.mxu0 0.0
        %1756 = vmatpush1.msra.mxu0 %v1656
        %1757 = vmatprep.subr.mxu0 0.0
        %1758 = vmatpush1.msra.mxu0 %v1655
        %1759 = vmatprep.subr.mxu0 0.0
        %1760 = vmatpush1.msra.mxu0 %v1654
        %1761 = vmatprep.subr.mxu0 0.0
        %1762 = vmatpush1.msra.mxu0 %v1653
        %1763 = vmatprep.subr.mxu0 0.0
        %1764 = vmatpush1.msra.mxu0 %v1652
        %1765 = vmatprep.subr.mxu0 0.0
        %1766 = vmatpush1.msra.mxu0 %v1651
        %1767 = vmatprep.subr.mxu0 0.0
        %1768 = vmatpush1.msra.mxu0 %v1650
        %1769 = vmatprep.subr.mxu0 0.0
        %1770 = vmatpush1.msra.mxu0 %v1649
        %1771 = vmatprep.subr.mxu0 0.0
        %1772 = vmatpush1.msra.mxu0 %v1648
        %1773 = vmatprep.subr.mxu0 0.0
        %1774 = vmatpush1.msra.mxu0 %v1647
        %1775 = vmatprep.subr.mxu0 0.0
        %1776 = vmatpush1.msra.mxu0 %v1646
        %1777 = vmatprep.subr.mxu0 0.0
        %1778 = vmatpush1.msra.mxu0 %v1645
        %1779 = vmatprep.subr.mxu0 0.0
        %1780 = vmatpush2.msra.mxu0 %v1676
        %1781 = vmatprep.subr.mxu0 0.0
        %1782 = vmatpush2.msra.mxu0 %v1675
        %1783 = vmatprep.subr.mxu0 0.0
        %1784 = vmatpush2.msra.mxu0 %v1674
        %1785 = vmatprep.subr.mxu0 0.0
        %1786 = vmatpush2.msra.mxu0 %v1673
        %1787 = vmatprep.subr.mxu0 0.0
        %1788 = vmatpush2.msra.mxu0 %v1672
        %1789 = vmatprep.subr.mxu0 0.0
        %1790 = vmatpush2.msra.mxu0 %v1671
        %1791 = vmatprep.subr.mxu0 0.0
        %1792 = vmatpush2.msra.mxu0 %v1670
        %1793 = vmatprep.subr.mxu0 0.0
        %1794 = vmatpush2.msra.mxu0 %v1669
        %1795 = vmatprep.subr.mxu0 0.0
        %1796 = vmatpush2.msra.mxu0 %v1668
        %1797 = vmatprep.subr.mxu0 0.0
        %1798 = vmatpush2.msra.mxu0 %v1667
        %1799 = vmatprep.subr.mxu0 0.0
        %1800 = vmatpush2.msra.mxu0 %v1666
        %1801 = vmatprep.subr.mxu0 0.0
        %1802 = vmatpush2.msra.mxu0 %v1665
        %1803 = vmatprep.subr.mxu0 0.0
        %1804 = vmatpush2.msra.mxu0 %v1664
        %1805 = vmatprep.subr.mxu0 0.0
        %1806 = vmatpush2.msra.mxu0 %v1663
        %1807 = vmatprep.subr.mxu0 0.0
        %1808 = vmatpush2.msra.mxu0 %v1662
        %1809 = vmatprep.subr.mxu0 0.0
        %1810 = vmatpush2.msra.mxu0 %v1661
        %1811 = vmatprep.mubr.f32.mxu0 %v1612
        %1812 = vmatmul.mubr.f32.gmra.mxu0 %v1605
        %v1813 = vpop.f32.mrf.mxu0
        %v1814 = vadd.f32 %v1744, %v1813
        %v1815 = vpop.f32.mrf.mxu0
        %1816 = vdwg.mxu0
        %v1817 = vadd.f32 %v561, %v1814
        %v1818 = vld [vmem:[%s5] sm:$0xff]
        %v1819 = vld [vmem:[%s5 + $0x8] sm:$0xff]
        %v1820 = vsel %vm1580, %v387, 0
        %1822 = vmatprep.subr.mxu0 0.0
        %1823 = vmatpush1.msra.mxu0 0.0
        %1824 = vmatprep.subr.mxu0 0.0
        %1825 = vmatpush1.msra.mxu0 0.0
        %1826 = vmatprep.subr.mxu0 0.0
        %1827 = vmatpush1.msra.mxu0 0.0
        %1828 = vmatprep.subr.mxu0 0.0
        %1829 = vmatpush1.msra.mxu0 0.0
        %1830 = vmatprep.subr.mxu0 0.0
        %1831 = vmatpush1.msra.mxu0 0.0
        %1832 = vmatprep.subr.mxu0 0.0
        %1833 = vmatpush1.msra.mxu0 0.0
        %1834 = vmatprep.subr.mxu0 0.0
        %1835 = vmatpush1.msra.mxu0 0.0
        %1836 = vmatprep.subr.mxu0 0.0
        %1837 = vmatpush1.msra.mxu0 0.0
        %1838 = vmatprep.subr.mxu0 0.0
        %1839 = vmatpush1.msra.mxu0 0.0
        %1840 = vmatprep.subr.mxu0 0.0
        %1841 = vmatpush1.msra.mxu0 0.0
        %1842 = vmatprep.subr.mxu0 0.0
        %1843 = vmatpush1.msra.mxu0 0.0
        %1844 = vmatprep.subr.mxu0 0.0
        %1845 = vmatpush1.msra.mxu0 0.0
        %1846 = vmatprep.subr.mxu0 0.0
        %1847 = vmatpush1.msra.mxu0 0.0
        %1848 = vmatprep.subr.mxu0 0.0
        %1849 = vmatpush1.msra.mxu0 0.0
        %1850 = vmatprep.subr.mxu0 0.0
        %1851 = vmatpush1.msra.mxu0 %v1819
        %1852 = vmatprep.subr.mxu0 0.0
        %1853 = vmatpush1.msra.mxu0 %v1818
        %1854 = vmatprep.subr.mxu0 0.0
        %1855 = vmatpush2.msra.mxu0 0.0
        %1856 = vmatprep.subr.mxu0 0.0
        %1857 = vmatpush2.msra.mxu0 0.0
        %1858 = vmatprep.subr.mxu0 0.0
        %1859 = vmatpush2.msra.mxu0 0.0
        %1860 = vmatprep.subr.mxu0 0.0
        %1861 = vmatpush2.msra.mxu0 0.0
        %1862 = vmatprep.subr.mxu0 0.0
        %1863 = vmatpush2.msra.mxu0 0.0
        %1864 = vmatprep.subr.mxu0 0.0
        %1865 = vmatpush2.msra.mxu0 0.0
        %1866 = vmatprep.subr.mxu0 0.0
        %1867 = vmatpush2.msra.mxu0 0.0
        %1868 = vmatprep.subr.mxu0 0.0
        %1869 = vmatpush2.msra.mxu0 0.0
        %1870 = vmatprep.subr.mxu0 0.0
        %1871 = vmatpush2.msra.mxu0 0.0
        %1872 = vmatprep.subr.mxu0 0.0
        %1873 = vmatpush2.msra.mxu0 0.0
        %1874 = vmatprep.subr.mxu0 0.0
        %1875 = vmatpush2.msra.mxu0 0.0
        %1876 = vmatprep.subr.mxu0 0.0
        %1877 = vmatpush2.msra.mxu0 0.0
        %1878 = vmatprep.subr.mxu0 0.0
        %1879 = vmatpush2.msra.mxu0 0.0
        %1880 = vmatprep.subr.mxu0 0.0
        %1881 = vmatpush2.msra.mxu0 0.0
        %1882 = vmatprep.subr.mxu0 0.0
        %1883 = vmatpush2.msra.mxu0 0.0
        %1884 = vmatprep.subr.mxu0 0.0
        %1885 = vmatpush2.msra.mxu0 0.0
        %1886 = vmatprep.mubr.f32.mxu0 0.0
        %1887 = vmatmul.mubr.f32.gmra.mxu0 %v1820
        %v1888 = vpop.f32.mrf.mxu0
        %v1889 = vadd.f32 0.0, %v1888
        %v1890 = vpop.f32.mrf.mxu0
        %1891 = vdwg.mxu0
        %v1892 = vadd.f32 %v1817, %v1889
        %1893 = vst [vmem:[%s378] sm:$0xff] %v1892
        %s1894 = sand.u32 %s253, 1
        %s1895 = scalar_lea.sflag [#allocation4], %s1894
        %s1896 = sand.u32 %s253, 1
        %s1897 = smul.addr %s1896, 8
        %s1898 = scalar_lea.vmem [#allocation5], %s1897
        // Predicated region
        $region65: #{tpu_custom_call.1} parent=59 // pred_check
          %p1899 = pneg %p263
        $region66: #{tpu_custom_call.1} parent=59 // pred_check_branch
          %1901 = sbr.rel (%p1899) target = $region68
        $region67: #{tpu_custom_call.1} parent=59 // pred_region
          %s1903 = ssub.s32 128, 128
          %1904 = vsyncadd %s1895, %s1903
          %s1905 = smul.addr %s25, 128
          %s1906 = scalar_lea.hbm %s10, %s1905
          %s1908 = sshll.u32 %s1898, 4
          %s1909 = int_to_ptr.vmem [resolvable:$true] %s1908
          %1911 = dma.vmem_to_hbm [thread:$0]  %s1909, 128, %s1906, %s1895
        $region68: #{tpu_custom_call.1} parent=59 // pred_fallthru
          _
      $region60: #{tpu_custom_call.1} parent=5 // pred_fallthru
        _
      %p1912 = scmp.le.s32.totalorder 2, %s20
      // Predicated region
      $region69: #{tpu_custom_call.1} parent=5 // pred_check
        %p1913 = pneg %p1912
      $region70: #{tpu_custom_call.1} parent=5 // pred_check_branch
        %1915 = sbr.rel (%p1913) target = $region72
      $region71: #{tpu_custom_call.1} parent=5 // pred_region
        %s1916 = ssub.s32 %s20, 2
        // Predicated region
        $region73: #{tpu_custom_call.1} parent=71 // pred_check
          %p1917 = pneg %p269
        $region74: #{tpu_custom_call.1} parent=71 // pred_check_branch
          %1919 = sbr.rel (%p1917) target = $region76
        $region75: #{tpu_custom_call.1} parent=71 // pred_region
          %s1920 = sand.u32 %s254, 1
          %s1921 = scalar_lea.sflag [#allocation4], %s1920
          %s1922 = sand.u32 %s254, 1
          %s1923 = smul.addr %s1922, 8
          %s1924 = scalar_lea.vmem [#allocation5], %s1923
          %1925 = dma.done %s1921, 128
        $region76: #{tpu_custom_call.1} parent=71 // pred_fallthru
          _
      $region72: #{tpu_custom_call.1} parent=5 // pred_fallthru
        _
    $region6: #{tpu_custom_call.1} parent=1 // loop_footer
      %s24 = sadd.s32 1, %s20
    $region7: #{tpu_custom_call.1} parent=1 // loop_footer_branch
      %19 = sbr.rel target = $region3
    $region8: #{tpu_custom_call.1} parent=1 // loop_exit
      _
    %1926 = vsyncpa [#allocation3], 1
    %s1927 = scalar_lea.sflag [#allocation3], 1
    %1928 = vsyncpa %s1927, 1
    %1929 = vsyncpa [#allocation4], 1
    %s1930 = scalar_lea.sflag [#allocation4], 1
    %1931 = vsyncpa %s1930, 1

</llo_original>
